<compile_context>
chip_gen: v7x
topology: tpu7x:2x2x1
jax: 0.10.0
libtpu: 0.0.40
codegen_flags: <defaults>
</compile_context>

<pallas_src>
import numpy as np
import jax
import jax.numpy as jnp
from jax import lax
from jax.experimental import pallas as pl
from jax.experimental.pallas import tpu as pltpu


def _round_up(a, m):
    return (a + m - 1) // m * m


def _gru_chunk_kernel(gx_ref, t_ref, wh_ref, bh_ref, hout_ref, h_scratch):
    """One batch tile x one chunk of timesteps of the GRU recurrence.

    gx_ref   : (TT, BT, 3*Hp) precomputed x @ [W_ir|W_iz|W_in] + [b_r|b_z|b_in]
    t_ref    : (BT, 1)        int32 sequence lengths
    wh_ref   : (Hp, 3*Hp)     concatenated hidden weights [W_hr|W_hz|W_hn]
    bh_ref   : (1, 3*Hp)      concatenated hidden biases  [0 | 0 | b_hn]
    hout_ref : (TT, BT, Hp)   hidden state per step (zeroed past each length)
    h_scratch: (BT, Hp)       carried hidden state (f32)
    """
    chunk = pl.program_id(1)
    tt = gx_ref.shape[0]
    bt, hp = h_scratch.shape

    @pl.when(chunk == 0)
    def _():
        h_scratch[...] = jnp.zeros_like(h_scratch)

    # Hoisted loop invariants (weights, bias broadcast, lengths).
    wh = wh_ref[...]                                     # (Hp, 3Hp)
    bh = jnp.broadcast_to(bh_ref[...], (bt, 3 * hp))     # (BT, 3Hp)
    t_vec = t_ref[...]                                   # (BT, 1) int32
    step0 = chunk * tt

    def body(i, h):
        g = gx_ref[i]                                    # (BT, 3Hp)
        # Single fused hidden matmul per step (one MXU push instead of three).
        gh = jnp.dot(h, wh, preferred_element_type=jnp.float32) + bh
        r = jax.nn.sigmoid(g[:, 0:hp] + gh[:, 0:hp])
        z = jax.nn.sigmoid(g[:, hp:2 * hp] + gh[:, hp:2 * hp])
        n = jnp.tanh(g[:, 2 * hp:3 * hp] + r * gh[:, 2 * hp:3 * hp])
        h_new = (1.0 - z) * n + z * h
        # Packed-sequence semantics: freeze h for finished sequences and emit
        # zeros past each sequence length (== pad_packed_sequence output).
        valid = (step0 + i) < t_vec                      # (BT, 1) bool
        h_next = jnp.where(valid, h_new, h)
        hout_ref[i] = jnp.where(valid, h_next, 0.0)
        return h_next

    h_scratch[...] = lax.fori_loop(0, tt, body, h_scratch[...], unroll=True)


def predictor_forward(x, t, params, *, time_tile=8, batch_tile=8):
    """x: (B, T, D) float32, t: (B,) int lengths, params: GRU/fc weights.

    Returns y_hat: (B, T_max, 1) with T_max = max(t), matching the PyTorch
    module (padded positions equal sigmoid(b_fc), since pad_packed_sequence
    zeroes the hidden state there before the Linear layer).
    """
    x = jnp.asarray(x, jnp.float32)
    B, T, D = x.shape
    H = params["whr"].shape[0]

    t_np = np.asarray(t, dtype=np.int32)
    # pad_packed_sequence trims the time axis to max(t) -> data-dependent
    # output shape; this host concretization matches PyTorch but is not
    # jit-traceable (same functional caveat as the reference module).
    t_max = int(t_np.max())

    Hp = _round_up(H, 128)                               # lane-pad hidden dim
    G3 = 3 * Hp
    Bp = _round_up(max(B, batch_tile), batch_tile)       # sublane-pad batch
    Tk = _round_up(t_max, time_tile)                     # run only up to max(t)

    def pad2(a, rows, cols):
        a = jnp.asarray(a, jnp.float32)
        return jnp.pad(a, ((0, rows - a.shape[0]), (0, cols - a.shape[1])))

    # Gate order (r, z, n); each gate padded to Hp lanes so in-kernel slices
    # land on 128-aligned lane offsets.
    wi = jnp.concatenate([pad2(params["wir"], D, Hp),
                          pad2(params["wiz"], D, Hp),
                          pad2(params["win"], D, Hp)], axis=1)           # (D, 3Hp)
    bi = jnp.concatenate([pad2(params["b_r"], 1, Hp),
                          pad2(params["b_z"], 1, Hp),
                          pad2(params["b_in"], 1, Hp)], axis=1)          # (1, 3Hp)
    wh = jnp.concatenate([pad2(params["whr"], Hp, Hp),
                          pad2(params["whz"], Hp, Hp),
                          pad2(params["whn"], Hp, Hp)], axis=1)          # (Hp, 3Hp)
    bh = jnp.concatenate([jnp.zeros((1, Hp), jnp.float32),
                          jnp.zeros((1, Hp), jnp.float32),
                          pad2(params["b_hn"], 1, Hp)], axis=1)          # (1, 3Hp)

    # Input projection hoisted out of the recurrence: one large matmul.
    x_use = x[:, :min(T, Tk), :]
    x_p = jnp.pad(x_use, ((0, Bp - B), (0, Tk - x_use.shape[1]), (0, 0)))
    gx = jnp.einsum("btd,dg->btg", x_p, wi,
                    preferred_element_type=jnp.float32) + bi             # (Bp, Tk, 3Hp)
    gx_tm = jnp.transpose(gx, (1, 0, 2))                                 # (Tk, Bp, 3Hp)

    t_col = jnp.pad(jnp.asarray(t_np, jnp.int32), (0, Bp - B)).reshape(Bp, 1)

    h_seq = pl.pallas_call(
        _gru_chunk_kernel,
        out_shape=jax.ShapeDtypeStruct((Tk, Bp, Hp), jnp.float32),
        grid_spec=pltpu.PrefetchScalarGridSpec(
            num_scalar_prefetch=0,
            grid=(Bp // batch_tile, Tk // time_tile),
            in_specs=[
                pl.BlockSpec((time_tile, batch_tile, G3),
                             lambda b, c: (c, b, 0)),                    # gx chunk
                pl.BlockSpec((batch_tile, 1), lambda b, c: (b, 0)),      # lengths
                pl.BlockSpec((Hp, G3), lambda b, c: (0, 0)),             # W_h (const)
                pl.BlockSpec((1, G3), lambda b, c: (0, 0)),              # b_h (const)
            ],
            out_specs=pl.BlockSpec((time_tile, batch_tile, Hp),
                                   lambda b, c: (c, b, 0)),              # lane-dense
            scratch_shapes=[pltpu.VMEM((batch_tile, Hp), jnp.float32)],
        ),
        compiler_params=pltpu.CompilerParams(
            # batch tiles are independent (megacore / v7x dual-TC); the time
            # axis is a sequential recurrence.
            dimension_semantics=("parallel", "arbitrary"),
        ),
    )(gx_tm, t_col, wh, bh)

    # fc + sigmoid as one big matmul outside the serial loop.
    h_bt = jnp.transpose(h_seq, (1, 0, 2))[:B, :t_max, :H]               # (B, Tmax, H)
    logits = jnp.einsum("bth,ho->bto", h_bt, params["w_fc"],
                        preferred_element_type=jnp.float32) + params["b_fc"]
    return jax.nn.sigmoid(logits)


def init_params(key, input_dim, hidden_dim):
    """Deterministic init mirroring PyTorch's uniform(-1/sqrt(H), 1/sqrt(H))."""
    k = 1.0 / np.sqrt(hidden_dim)
    keys = jax.random.split(key, 12)

    def u(kk, shape):
        return jax.random.uniform(kk, shape, jnp.float32, -k, k)

    wir = u(keys[0], (input_dim, hidden_dim))
    wiz = u(keys[1], (input_dim, hidden_dim))
    win = u(keys[2], (input_dim, hidden_dim))
    whr = u(keys[3], (hidden_dim, hidden_dim))
    whz = u(keys[4], (hidden_dim, hidden_dim))
    whn = u(keys[5], (hidden_dim, hidden_dim))
    # b_ih + b_hh combine for r and z; the n gate keeps b_in / b_hn apart
    # because b_hn is scaled by r.
    b_r = u(keys[6], (1, hidden_dim)) + u(keys[7], (1, hidden_dim))
    b_z = u(keys[8], (1, hidden_dim)) + u(keys[9], (1, hidden_dim))
    b_in = u(keys[10], (1, hidden_dim))
    b_hn = u(keys[11], (1, hidden_dim))

    kfc = 1.0 / np.sqrt(hidden_dim)
    kf1, kf2 = jax.random.split(jax.random.fold_in(key, 123))
    w_fc = jax.random.uniform(kf1, (hidden_dim, 1), jnp.float32, -kfc, kfc)
    b_fc = jax.random.uniform(kf2, (1, 1), jnp.float32, -kfc, kfc)

    return dict(wir=wir, wiz=wiz, win=win, whr=whr, whz=whz, whn=whn,
                b_r=b_r, b_z=b_z, b_in=b_in, b_hn=b_hn, w_fc=w_fc, b_fc=b_fc)


def _reference_forward(x, t, params):
    """Pure-JAX f32 reference of the PyTorch module (for the self-check)."""
    x = jnp.asarray(x, jnp.float32)
    B, _, _ = x.shape
    H = params["whr"].shape[0]
    t_np = np.asarray(t)
    t_max = int(t_np.max())
    h = jnp.zeros((B, H), jnp.float32)
    hs = []
    for s in range(t_max):
        xs = x[:, s, :]
        r = jax.nn.sigmoid(xs @ params["wir"] + h @ params["whr"] + params["b_r"])
        z = jax.nn.sigmoid(xs @ params["wiz"] + h @ params["whz"] + params["b_z"])
        n = jnp.tanh(xs @ params["win"] + params["b_in"]
                     + r * (h @ params["whn"] + params["b_hn"]))
        h_new = (1.0 - z) * n + z * h
        valid = (s < t_np)[:, None]
        h = jnp.where(valid, h_new, h)
        hs.append(jnp.where(valid, h, 0.0))          # pad_packed_sequence zeros
    hseq = jnp.stack(hs, axis=1)                     # (B, Tmax, H)
    return jax.nn.sigmoid(hseq @ params["w_fc"] + params["b_fc"])


if __name__ == "__main__":
    key = jax.random.PRNGKey(0)
    B, T, D, H = 2, 8, 4, 32

    kx, kp = jax.random.split(key)
    x = jax.random.normal(kx, (B, T, D), dtype=jnp.float32)
    t = np.array([8, 5], dtype=np.int32)   # per-sequence valid lengths

    params = init_params(kp, D, H)

    y_hat = predictor_forward(x, t, params)
    jax.block_until_ready(y_hat)

    assert y_hat.shape == (B, int(np.max(t)), 1)

    # Numerical check against the pure-JAX reference of the PyTorch module.
    y_ref = _reference_forward(x, t, params)
    err = float(jnp.max(jnp.abs(y_hat - y_ref)))
    assert err < 5e-3, f"max abs err vs reference: {err}"

    # Padded positions (seq 1, steps >= 5): hidden state is zeroed by
    # pad_packed_sequence, so the module outputs sigmoid(b_fc) there.
    pad_val = float(jax.nn.sigmoid(params["b_fc"][0, 0]))
    assert np.allclose(np.asarray(y_hat)[1, 5:, 0], pad_val, atol=5e-3)

    print("KERNEL_OK")
</pallas_src>

<mosaic_0001>
module attributes {stable_mosaic.version = 11 : i64} {
  func.func @_gru_chunk_kernel(%arg0: i32, %arg1: i32, %arg2: memref<8x8x384xf32, #tpu.memory_space<vmem>>, %arg3: memref<8x1xi32, #tpu.memory_space<vmem>>, %arg4: memref<128x384xf32, #tpu.memory_space<vmem>>, %arg5: memref<1x384xf32, #tpu.memory_space<vmem>>, %arg6: memref<8x8x128xf32, #tpu.memory_space<vmem>>, %arg7: memref<8x128xf32, #tpu.memory_space<vmem>>) attributes {dimension_semantics = [#tpu.dimension_semantics<parallel>, #tpu.dimension_semantics<arbitrary>], iteration_bounds = array<i64: 1, 1>, scalar_prefetch = 0 : i64, scratch_operands = 1 : i64, tpu.core_type = #tpu.core_type<tc>, window_params = [{transform_indices = @transform_0, window_bounds = array<i64: 8, 8, 384>}, {transform_indices = @transform_1, window_bounds = array<i64: 8, 1>}, {pipeline_mode = #tpu.pipeline_mode<synchronous>, transform_indices = @transform_2, window_bounds = array<i64: 128, 384>}, {pipeline_mode = #tpu.pipeline_mode<synchronous>, transform_indices = @transform_3, window_bounds = array<i64: 1, 384>}, {transform_indices = @transform_4, window_bounds = array<i64: 8, 8, 128>}]} {
    %c0_i32 = arith.constant 0 : i32
    %0 = arith.cmpi eq, %arg1, %c0_i32 : i32
    %1 = arith.extui %0 : i1 to i32
    %c0_i32_0 = arith.constant 0 : i32
    %2 = arith.cmpi ne, %1, %c0_i32_0 : i32
    scf.if %2 {
      %cst_83 = arith.constant 0.000000e+00 : f32
      %371 = vector.broadcast %cst_83 : f32 to vector<8x128xf32>
      %c0_84 = arith.constant 0 : index
      %c0_85 = arith.constant 0 : index
      %372 = vector.load %arg7[%c0_84, %c0_85] : memref<8x128xf32, #tpu.memory_space<vmem>>, vector<8x128xf32>
      tpu.vector_store %arg7[%c0_84, %c0_85], %371 {strides = array<i32>} : memref<8x128xf32, #tpu.memory_space<vmem>>, vector<8x128xf32>,
    } else {
    }
    %c0 = arith.constant 0 : index
    %c0_1 = arith.constant 0 : index
    %3 = vector.load %arg4[%c0, %c0_1] : memref<128x384xf32, #tpu.memory_space<vmem>>, vector<128x384xf32>
    %c0_2 = arith.constant 0 : index
    %c0_3 = arith.constant 0 : index
    %4 = vector.load %arg5[%c0_2, %c0_3] : memref<1x384xf32, #tpu.memory_space<vmem>>, vector<1x384xf32>
    %5 = vector.shape_cast %4 : vector<1x384xf32> to vector<1x384xf32>
    %6 = vector.broadcast %5 : vector<1x384xf32> to vector<8x384xf32>
    %c0_4 = arith.constant 0 : index
    %c0_5 = arith.constant 0 : index
    %7 = vector.load %arg3[%c0_4, %c0_5] : memref<8x1xi32, #tpu.memory_space<vmem>>, vector<8x1xi32>
    %c8_i32 = arith.constant 8 : i32
    %8 = arith.muli %arg1, %c8_i32 : i32
    %c0_6 = arith.constant 0 : index
    %c0_7 = arith.constant 0 : index
    %9 = vector.load %arg7[%c0_6, %c0_7] : memref<8x128xf32, #tpu.memory_space<vmem>>, vector<8x128xf32>
    %c0_i32_8 = arith.constant 0 : i32
    %10 = arith.index_cast %c0_i32_8 : i32 to index
    %c0_9 = arith.constant 0 : index
    %c0_10 = arith.constant 0 : index
    %11 = vector.load %arg2[%10, %c0_9, %c0_10] : memref<8x8x384xf32, #tpu.memory_space<vmem>>, vector<1x8x384xf32>
    %12 = vector.shape_cast %11 : vector<1x8x384xf32> to vector<8x384xf32>
    %cst = arith.constant dense<0.000000e+00> : vector<8x384xf32>
    %13 = tpu.matmul %9, %3, %cst {dimension_numbers = #tpu.dot_dimension_numbers<[1], [0], [0], [1], [0, 0, 1, 1], [], []>} : vector<8x128xf32>, vector<128x384xf32>, vector<8x384xf32> -> vector<8x384xf32>
    %14 = arith.addf %13, %6 : vector<8x384xf32>
    %15 = vector.extract_strided_slice %12 {offsets = [0, 0], sizes = [8, 128], strides = [1, 1]} : vector<8x384xf32> to vector<8x128xf32>
    %16 = vector.extract_strided_slice %14 {offsets = [0, 0], sizes = [8, 128], strides = [1, 1]} : vector<8x384xf32> to vector<8x128xf32>
    %17 = arith.addf %15, %16 : vector<8x128xf32>
    %18 = arith.negf %17 : vector<8x128xf32>
    %19 = math.exp %18 : vector<8x128xf32>
    %cst_11 = arith.constant 1.000000e+00 : f32
    %20 = vector.broadcast %cst_11 : f32 to vector<8x128xf32>
    %21 = arith.addf %20, %19 : vector<8x128xf32>
    %22 = arith.divf %20, %21 : vector<8x128xf32>
    %23 = vector.extract_strided_slice %12 {offsets = [0, 128], sizes = [8, 128], strides = [1, 1]} : vector<8x384xf32> to vector<8x128xf32>
    %24 = vector.extract_strided_slice %14 {offsets = [0, 128], sizes = [8, 128], strides = [1, 1]} : vector<8x384xf32> to vector<8x128xf32>
    %25 = arith.addf %23, %24 : vector<8x128xf32>
    %26 = arith.negf %25 : vector<8x128xf32>
    %27 = math.exp %26 : vector<8x128xf32>
    %cst_12 = arith.constant 1.000000e+00 : f32
    %28 = vector.broadcast %cst_12 : f32 to vector<8x128xf32>
    %29 = arith.addf %28, %27 : vector<8x128xf32>
    %30 = arith.divf %28, %29 : vector<8x128xf32>
    %31 = vector.extract_strided_slice %12 {offsets = [0, 256], sizes = [8, 128], strides = [1, 1]} : vector<8x384xf32> to vector<8x128xf32>
    %32 = vector.extract_strided_slice %14 {offsets = [0, 256], sizes = [8, 128], strides = [1, 1]} : vector<8x384xf32> to vector<8x128xf32>
    %33 = arith.mulf %22, %32 : vector<8x128xf32>
    %34 = arith.addf %31, %33 : vector<8x128xf32>
    %35 = math.tanh %34 : vector<8x128xf32>
    %cst_13 = arith.constant 1.000000e+00 : f32
    %36 = vector.broadcast %cst_13 : f32 to vector<8x128xf32>
    %37 = arith.subf %36, %30 : vector<8x128xf32>
    %38 = arith.mulf %37, %35 : vector<8x128xf32>
    %39 = arith.mulf %30, %9 : vector<8x128xf32>
    %40 = arith.addf %38, %39 : vector<8x128xf32>
    %41 = arith.addi %8, %c0_i32_8 : i32
    %42 = vector.broadcast %41 : i32 to vector<8x1xi32>
    %43 = arith.cmpi slt, %42, %7 : vector<8x1xi32>
    %44 = vector.shape_cast %43 : vector<8x1xi1> to vector<8x1xi1>
    %45 = vector.broadcast %44 : vector<8x1xi1> to vector<8x128xi1>
    %46 = arith.select %45, %40, %9 : vector<8x128xi1>, vector<8x128xf32>
    %cst_14 = arith.constant 0.000000e+00 : f32
    %47 = vector.shape_cast %43 : vector<8x1xi1> to vector<8x1xi1>
    %48 = vector.broadcast %47 : vector<8x1xi1> to vector<8x128xi1>
    %49 = vector.broadcast %cst_14 : f32 to vector<8x128xf32>
    %50 = arith.select %48, %46, %49 : vector<8x128xi1>, vector<8x128xf32>
    %51 = arith.index_cast %c0_i32_8 : i32 to index
    %c0_15 = arith.constant 0 : index
    %c0_16 = arith.constant 0 : index
    %52 = vector.load %arg6[%51, %c0_15, %c0_16] : memref<8x8x128xf32, #tpu.memory_space<vmem>>, vector<1x8x128xf32>
    %53 = vector.shape_cast %52 : vector<1x8x128xf32> to vector<8x128xf32>
    %54 = vector.shape_cast %50 : vector<8x128xf32> to vector<1x8x128xf32>
    tpu.vector_store %arg6[%51, %c0_15, %c0_16], %54 {strides = array<i32>} : memref<8x8x128xf32, #tpu.memory_space<vmem>>, vector<1x8x128xf32>,
    %c1_i32 = arith.constant 1 : i32
    %55 = arith.index_cast %c1_i32 : i32 to index
    %c0_17 = arith.constant 0 : index
    %c0_18 = arith.constant 0 : index
    %56 = vector.load %arg2[%55, %c0_17, %c0_18] : memref<8x8x384xf32, #tpu.memory_space<vmem>>, vector<1x8x384xf32>
    %57 = vector.shape_cast %56 : vector<1x8x384xf32> to vector<8x384xf32>
    %cst_19 = arith.constant dense<0.000000e+00> : vector<8x384xf32>
    %58 = tpu.matmul %46, %3, %cst_19 {dimension_numbers = #tpu.dot_dimension_numbers<[1], [0], [0], [1], [0, 0, 1, 1], [], []>} : vector<8x128xf32>, vector<128x384xf32>, vector<8x384xf32> -> vector<8x384xf32>
    %59 = arith.addf %58, %6 : vector<8x384xf32>
    %60 = vector.extract_strided_slice %57 {offsets = [0, 0], sizes = [8, 128], strides = [1, 1]} : vector<8x384xf32> to vector<8x128xf32>
    %61 = vector.extract_strided_slice %59 {offsets = [0, 0], sizes = [8, 128], strides = [1, 1]} : vector<8x384xf32> to vector<8x128xf32>
    %62 = arith.addf %60, %61 : vector<8x128xf32>
    %63 = arith.negf %62 : vector<8x128xf32>
    %64 = math.exp %63 : vector<8x128xf32>
    %cst_20 = arith.constant 1.000000e+00 : f32
    %65 = vector.broadcast %cst_20 : f32 to vector<8x128xf32>
    %66 = arith.addf %65, %64 : vector<8x128xf32>
    %67 = arith.divf %65, %66 : vector<8x128xf32>
    %68 = vector.extract_strided_slice %57 {offsets = [0, 128], sizes = [8, 128], strides = [1, 1]} : vector<8x384xf32> to vector<8x128xf32>
    %69 = vector.extract_strided_slice %59 {offsets = [0, 128], sizes = [8, 128], strides = [1, 1]} : vector<8x384xf32> to vector<8x128xf32>
    %70 = arith.addf %68, %69 : vector<8x128xf32>
    %71 = arith.negf %70 : vector<8x128xf32>
    %72 = math.exp %71 : vector<8x128xf32>
    %cst_21 = arith.constant 1.000000e+00 : f32
    %73 = vector.broadcast %cst_21 : f32 to vector<8x128xf32>
    %74 = arith.addf %73, %72 : vector<8x128xf32>
    %75 = arith.divf %73, %74 : vector<8x128xf32>
    %76 = vector.extract_strided_slice %57 {offsets = [0, 256], sizes = [8, 128], strides = [1, 1]} : vector<8x384xf32> to vector<8x128xf32>
    %77 = vector.extract_strided_slice %59 {offsets = [0, 256], sizes = [8, 128], strides = [1, 1]} : vector<8x384xf32> to vector<8x128xf32>
    %78 = arith.mulf %67, %77 : vector<8x128xf32>
    %79 = arith.addf %76, %78 : vector<8x128xf32>
    %80 = math.tanh %79 : vector<8x128xf32>
    %cst_22 = arith.constant 1.000000e+00 : f32
    %81 = vector.broadcast %cst_22 : f32 to vector<8x128xf32>
    %82 = arith.subf %81, %75 : vector<8x128xf32>
    %83 = arith.mulf %82, %80 : vector<8x128xf32>
    %84 = arith.mulf %75, %46 : vector<8x128xf32>
    %85 = arith.addf %83, %84 : vector<8x128xf32>
    %86 = arith.addi %8, %c1_i32 : i32
    %87 = vector.broadcast %86 : i32 to vector<8x1xi32>
    %88 = arith.cmpi slt, %87, %7 : vector<8x1xi32>
    %89 = vector.shape_cast %88 : vector<8x1xi1> to vector<8x1xi1>
    %90 = vector.broadcast %89 : vector<8x1xi1> to vector<8x128xi1>
    %91 = arith.select %90, %85, %46 : vector<8x128xi1>, vector<8x128xf32>
    %cst_23 = arith.constant 0.000000e+00 : f32
    %92 = vector.shape_cast %88 : vector<8x1xi1> to vector<8x1xi1>
    %93 = vector.broadcast %92 : vector<8x1xi1> to vector<8x128xi1>
    %94 = vector.broadcast %cst_23 : f32 to vector<8x128xf32>
    %95 = arith.select %93, %91, %94 : vector<8x128xi1>, vector<8x128xf32>
    %96 = arith.index_cast %c1_i32 : i32 to index
    %c0_24 = arith.constant 0 : index
    %c0_25 = arith.constant 0 : index
    %97 = vector.load %arg6[%96, %c0_24, %c0_25] : memref<8x8x128xf32, #tpu.memory_space<vmem>>, vector<1x8x128xf32>
    %98 = vector.shape_cast %97 : vector<1x8x128xf32> to vector<8x128xf32>
    %99 = vector.shape_cast %95 : vector<8x128xf32> to vector<1x8x128xf32>
    tpu.vector_store %arg6[%96, %c0_24, %c0_25], %99 {strides = array<i32>} : memref<8x8x128xf32, #tpu.memory_space<vmem>>, vector<1x8x128xf32>,
    %c2_i32 = arith.constant 2 : i32
    %100 = arith.index_cast %c2_i32 : i32 to index
    %c0_26 = arith.constant 0 : index
    %c0_27 = arith.constant 0 : index
    %101 = vector.load %arg2[%100, %c0_26, %c0_27] : memref<8x8x384xf32, #tpu.memory_space<vmem>>, vector<1x8x384xf32>
    %102 = vector.shape_cast %101 : vector<1x8x384xf32> to vector<8x384xf32>
    %cst_28 = arith.constant dense<0.000000e+00> : vector<8x384xf32>
    %103 = tpu.matmul %91, %3, %cst_28 {dimension_numbers = #tpu.dot_dimension_numbers<[1], [0], [0], [1], [0, 0, 1, 1], [], []>} : vector<8x128xf32>, vector<128x384xf32>, vector<8x384xf32> -> vector<8x384xf32>
    %104 = arith.addf %103, %6 : vector<8x384xf32>
    %105 = vector.extract_strided_slice %102 {offsets = [0, 0], sizes = [8, 128], strides = [1, 1]} : vector<8x384xf32> to vector<8x128xf32>
    %106 = vector.extract_strided_slice %104 {offsets = [0, 0], sizes = [8, 128], strides = [1, 1]} : vector<8x384xf32> to vector<8x128xf32>
    %107 = arith.addf %105, %106 : vector<8x128xf32>
    %108 = arith.negf %107 : vector<8x128xf32>
    %109 = math.exp %108 : vector<8x128xf32>
    %cst_29 = arith.constant 1.000000e+00 : f32
    %110 = vector.broadcast %cst_29 : f32 to vector<8x128xf32>
    %111 = arith.addf %110, %109 : vector<8x128xf32>
    %112 = arith.divf %110, %111 : vector<8x128xf32>
    %113 = vector.extract_strided_slice %102 {offsets = [0, 128], sizes = [8, 128], strides = [1, 1]} : vector<8x384xf32> to vector<8x128xf32>
    %114 = vector.extract_strided_slice %104 {offsets = [0, 128], sizes = [8, 128], strides = [1, 1]} : vector<8x384xf32> to vector<8x128xf32>
    %115 = arith.addf %113, %114 : vector<8x128xf32>
    %116 = arith.negf %115 : vector<8x128xf32>
    %117 = math.exp %116 : vector<8x128xf32>
    %cst_30 = arith.constant 1.000000e+00 : f32
    %118 = vector.broadcast %cst_30 : f32 to vector<8x128xf32>
    %119 = arith.addf %118, %117 : vector<8x128xf32>
    %120 = arith.divf %118, %119 : vector<8x128xf32>
    %121 = vector.extract_strided_slice %102 {offsets = [0, 256], sizes = [8, 128], strides = [1, 1]} : vector<8x384xf32> to vector<8x128xf32>
    %122 = vector.extract_strided_slice %104 {offsets = [0, 256], sizes = [8, 128], strides = [1, 1]} : vector<8x384xf32> to vector<8x128xf32>
    %123 = arith.mulf %112, %122 : vector<8x128xf32>
    %124 = arith.addf %121, %123 : vector<8x128xf32>
    %125 = math.tanh %124 : vector<8x128xf32>
    %cst_31 = arith.constant 1.000000e+00 : f32
    %126 = vector.broadcast %cst_31 : f32 to vector<8x128xf32>
    %127 = arith.subf %126, %120 : vector<8x128xf32>
    %128 = arith.mulf %127, %125 : vector<8x128xf32>
    %129 = arith.mulf %120, %91 : vector<8x128xf32>
    %130 = arith.addf %128, %129 : vector<8x128xf32>
    %131 = arith.addi %8, %c2_i32 : i32
    %132 = vector.broadcast %131 : i32 to vector<8x1xi32>
    %133 = arith.cmpi slt, %132, %7 : vector<8x1xi32>
    %134 = vector.shape_cast %133 : vector<8x1xi1> to vector<8x1xi1>
    %135 = vector.broadcast %134 : vector<8x1xi1> to vector<8x128xi1>
    %136 = arith.select %135, %130, %91 : vector<8x128xi1>, vector<8x128xf32>
    %cst_32 = arith.constant 0.000000e+00 : f32
    %137 = vector.shape_cast %133 : vector<8x1xi1> to vector<8x1xi1>
    %138 = vector.broadcast %137 : vector<8x1xi1> to vector<8x128xi1>
    %139 = vector.broadcast %cst_32 : f32 to vector<8x128xf32>
    %140 = arith.select %138, %136, %139 : vector<8x128xi1>, vector<8x128xf32>
    %141 = arith.index_cast %c2_i32 : i32 to index
    %c0_33 = arith.constant 0 : index
    %c0_34 = arith.constant 0 : index
    %142 = vector.load %arg6[%141, %c0_33, %c0_34] : memref<8x8x128xf32, #tpu.memory_space<vmem>>, vector<1x8x128xf32>
    %143 = vector.shape_cast %142 : vector<1x8x128xf32> to vector<8x128xf32>
    %144 = vector.shape_cast %140 : vector<8x128xf32> to vector<1x8x128xf32>
    tpu.vector_store %arg6[%141, %c0_33, %c0_34], %144 {strides = array<i32>} : memref<8x8x128xf32, #tpu.memory_space<vmem>>, vector<1x8x128xf32>,
    %c3_i32 = arith.constant 3 : i32
    %145 = arith.index_cast %c3_i32 : i32 to index
    %c0_35 = arith.constant 0 : index
    %c0_36 = arith.constant 0 : index
    %146 = vector.load %arg2[%145, %c0_35, %c0_36] : memref<8x8x384xf32, #tpu.memory_space<vmem>>, vector<1x8x384xf32>
    %147 = vector.shape_cast %146 : vector<1x8x384xf32> to vector<8x384xf32>
    %cst_37 = arith.constant dense<0.000000e+00> : vector<8x384xf32>
    %148 = tpu.matmul %136, %3, %cst_37 {dimension_numbers = #tpu.dot_dimension_numbers<[1], [0], [0], [1], [0, 0, 1, 1], [], []>} : vector<8x128xf32>, vector<128x384xf32>, vector<8x384xf32> -> vector<8x384xf32>
    %149 = arith.addf %148, %6 : vector<8x384xf32>
    %150 = vector.extract_strided_slice %147 {offsets = [0, 0], sizes = [8, 128], strides = [1, 1]} : vector<8x384xf32> to vector<8x128xf32>
    %151 = vector.extract_strided_slice %149 {offsets = [0, 0], sizes = [8, 128], strides = [1, 1]} : vector<8x384xf32> to vector<8x128xf32>
    %152 = arith.addf %150, %151 : vector<8x128xf32>
    %153 = arith.negf %152 : vector<8x128xf32>
    %154 = math.exp %153 : vector<8x128xf32>
    %cst_38 = arith.constant 1.000000e+00 : f32
    %155 = vector.broadcast %cst_38 : f32 to vector<8x128xf32>
    %156 = arith.addf %155, %154 : vector<8x128xf32>
    %157 = arith.divf %155, %156 : vector<8x128xf32>
    %158 = vector.extract_strided_slice %147 {offsets = [0, 128], sizes = [8, 128], strides = [1, 1]} : vector<8x384xf32> to vector<8x128xf32>
    %159 = vector.extract_strided_slice %149 {offsets = [0, 128], sizes = [8, 128], strides = [1, 1]} : vector<8x384xf32> to vector<8x128xf32>
    %160 = arith.addf %158, %159 : vector<8x128xf32>
    %161 = arith.negf %160 : vector<8x128xf32>
    %162 = math.exp %161 : vector<8x128xf32>
    %cst_39 = arith.constant 1.000000e+00 : f32
    %163 = vector.broadcast %cst_39 : f32 to vector<8x128xf32>
    %164 = arith.addf %163, %162 : vector<8x128xf32>
    %165 = arith.divf %163, %164 : vector<8x128xf32>
    %166 = vector.extract_strided_slice %147 {offsets = [0, 256], sizes = [8, 128], strides = [1, 1]} : vector<8x384xf32> to vector<8x128xf32>
    %167 = vector.extract_strided_slice %149 {offsets = [0, 256], sizes = [8, 128], strides = [1, 1]} : vector<8x384xf32> to vector<8x128xf32>
    %168 = arith.mulf %157, %167 : vector<8x128xf32>
    %169 = arith.addf %166, %168 : vector<8x128xf32>
    %170 = math.tanh %169 : vector<8x128xf32>
    %cst_40 = arith.constant 1.000000e+00 : f32
    %171 = vector.broadcast %cst_40 : f32 to vector<8x128xf32>
    %172 = arith.subf %171, %165 : vector<8x128xf32>
    %173 = arith.mulf %172, %170 : vector<8x128xf32>
    %174 = arith.mulf %165, %136 : vector<8x128xf32>
    %175 = arith.addf %173, %174 : vector<8x128xf32>
    %176 = arith.addi %8, %c3_i32 : i32
    %177 = vector.broadcast %176 : i32 to vector<8x1xi32>
    %178 = arith.cmpi slt, %177, %7 : vector<8x1xi32>
    %179 = vector.shape_cast %178 : vector<8x1xi1> to vector<8x1xi1>
    %180 = vector.broadcast %179 : vector<8x1xi1> to vector<8x128xi1>
    %181 = arith.select %180, %175, %136 : vector<8x128xi1>, vector<8x128xf32>
    %cst_41 = arith.constant 0.000000e+00 : f32
    %182 = vector.shape_cast %178 : vector<8x1xi1> to vector<8x1xi1>
    %183 = vector.broadcast %182 : vector<8x1xi1> to vector<8x128xi1>
    %184 = vector.broadcast %cst_41 : f32 to vector<8x128xf32>
    %185 = arith.select %183, %181, %184 : vector<8x128xi1>, vector<8x128xf32>
    %186 = arith.index_cast %c3_i32 : i32 to index
    %c0_42 = arith.constant 0 : index
    %c0_43 = arith.constant 0 : index
    %187 = vector.load %arg6[%186, %c0_42, %c0_43] : memref<8x8x128xf32, #tpu.memory_space<vmem>>, vector<1x8x128xf32>
    %188 = vector.shape_cast %187 : vector<1x8x128xf32> to vector<8x128xf32>
    %189 = vector.shape_cast %185 : vector<8x128xf32> to vector<1x8x128xf32>
    tpu.vector_store %arg6[%186, %c0_42, %c0_43], %189 {strides = array<i32>} : memref<8x8x128xf32, #tpu.memory_space<vmem>>, vector<1x8x128xf32>,
    %c4_i32 = arith.constant 4 : i32
    %190 = arith.index_cast %c4_i32 : i32 to index
    %c0_44 = arith.constant 0 : index
    %c0_45 = arith.constant 0 : index
    %191 = vector.load %arg2[%190, %c0_44, %c0_45] : memref<8x8x384xf32, #tpu.memory_space<vmem>>, vector<1x8x384xf32>
    %192 = vector.shape_cast %191 : vector<1x8x384xf32> to vector<8x384xf32>
    %cst_46 = arith.constant dense<0.000000e+00> : vector<8x384xf32>
    %193 = tpu.matmul %181, %3, %cst_46 {dimension_numbers = #tpu.dot_dimension_numbers<[1], [0], [0], [1], [0, 0, 1, 1], [], []>} : vector<8x128xf32>, vector<128x384xf32>, vector<8x384xf32> -> vector<8x384xf32>
    %194 = arith.addf %193, %6 : vector<8x384xf32>
    %195 = vector.extract_strided_slice %192 {offsets = [0, 0], sizes = [8, 128], strides = [1, 1]} : vector<8x384xf32> to vector<8x128xf32>
    %196 = vector.extract_strided_slice %194 {offsets = [0, 0], sizes = [8, 128], strides = [1, 1]} : vector<8x384xf32> to vector<8x128xf32>
    %197 = arith.addf %195, %196 : vector<8x128xf32>
    %198 = arith.negf %197 : vector<8x128xf32>
    %199 = math.exp %198 : vector<8x128xf32>
    %cst_47 = arith.constant 1.000000e+00 : f32
    %200 = vector.broadcast %cst_47 : f32 to vector<8x128xf32>
    %201 = arith.addf %200, %199 : vector<8x128xf32>
    %202 = arith.divf %200, %201 : vector<8x128xf32>
    %203 = vector.extract_strided_slice %192 {offsets = [0, 128], sizes = [8, 128], strides = [1, 1]} : vector<8x384xf32> to vector<8x128xf32>
    %204 = vector.extract_strided_slice %194 {offsets = [0, 128], sizes = [8, 128], strides = [1, 1]} : vector<8x384xf32> to vector<8x128xf32>
    %205 = arith.addf %203, %204 : vector<8x128xf32>
    %206 = arith.negf %205 : vector<8x128xf32>
    %207 = math.exp %206 : vector<8x128xf32>
    %cst_48 = arith.constant 1.000000e+00 : f32
    %208 = vector.broadcast %cst_48 : f32 to vector<8x128xf32>
    %209 = arith.addf %208, %207 : vector<8x128xf32>
    %210 = arith.divf %208, %209 : vector<8x128xf32>
    %211 = vector.extract_strided_slice %192 {offsets = [0, 256], sizes = [8, 128], strides = [1, 1]} : vector<8x384xf32> to vector<8x128xf32>
    %212 = vector.extract_strided_slice %194 {offsets = [0, 256], sizes = [8, 128], strides = [1, 1]} : vector<8x384xf32> to vector<8x128xf32>
    %213 = arith.mulf %202, %212 : vector<8x128xf32>
    %214 = arith.addf %211, %213 : vector<8x128xf32>
    %215 = math.tanh %214 : vector<8x128xf32>
    %cst_49 = arith.constant 1.000000e+00 : f32
    %216 = vector.broadcast %cst_49 : f32 to vector<8x128xf32>
    %217 = arith.subf %216, %210 : vector<8x128xf32>
    %218 = arith.mulf %217, %215 : vector<8x128xf32>
    %219 = arith.mulf %210, %181 : vector<8x128xf32>
    %220 = arith.addf %218, %219 : vector<8x128xf32>
    %221 = arith.addi %8, %c4_i32 : i32
    %222 = vector.broadcast %221 : i32 to vector<8x1xi32>
    %223 = arith.cmpi slt, %222, %7 : vector<8x1xi32>
    %224 = vector.shape_cast %223 : vector<8x1xi1> to vector<8x1xi1>
    %225 = vector.broadcast %224 : vector<8x1xi1> to vector<8x128xi1>
    %226 = arith.select %225, %220, %181 : vector<8x128xi1>, vector<8x128xf32>
    %cst_50 = arith.constant 0.000000e+00 : f32
    %227 = vector.shape_cast %223 : vector<8x1xi1> to vector<8x1xi1>
    %228 = vector.broadcast %227 : vector<8x1xi1> to vector<8x128xi1>
    %229 = vector.broadcast %cst_50 : f32 to vector<8x128xf32>
    %230 = arith.select %228, %226, %229 : vector<8x128xi1>, vector<8x128xf32>
    %231 = arith.index_cast %c4_i32 : i32 to index
    %c0_51 = arith.constant 0 : index
    %c0_52 = arith.constant 0 : index
    %232 = vector.load %arg6[%231, %c0_51, %c0_52] : memref<8x8x128xf32, #tpu.memory_space<vmem>>, vector<1x8x128xf32>
    %233 = vector.shape_cast %232 : vector<1x8x128xf32> to vector<8x128xf32>
    %234 = vector.shape_cast %230 : vector<8x128xf32> to vector<1x8x128xf32>
    tpu.vector_store %arg6[%231, %c0_51, %c0_52], %234 {strides = array<i32>} : memref<8x8x128xf32, #tpu.memory_space<vmem>>, vector<1x8x128xf32>,
    %c5_i32 = arith.constant 5 : i32
    %235 = arith.index_cast %c5_i32 : i32 to index
    %c0_53 = arith.constant 0 : index
    %c0_54 = arith.constant 0 : index
    %236 = vector.load %arg2[%235, %c0_53, %c0_54] : memref<8x8x384xf32, #tpu.memory_space<vmem>>, vector<1x8x384xf32>
    %237 = vector.shape_cast %236 : vector<1x8x384xf32> to vector<8x384xf32>
    %cst_55 = arith.constant dense<0.000000e+00> : vector<8x384xf32>
    %238 = tpu.matmul %226, %3, %cst_55 {dimension_numbers = #tpu.dot_dimension_numbers<[1], [0], [0], [1], [0, 0, 1, 1], [], []>} : vector<8x128xf32>, vector<128x384xf32>, vector<8x384xf32> -> vector<8x384xf32>
    %239 = arith.addf %238, %6 : vector<8x384xf32>
    %240 = vector.extract_strided_slice %237 {offsets = [0, 0], sizes = [8, 128], strides = [1, 1]} : vector<8x384xf32> to vector<8x128xf32>
    %241 = vector.extract_strided_slice %239 {offsets = [0, 0], sizes = [8, 128], strides = [1, 1]} : vector<8x384xf32> to vector<8x128xf32>
    %242 = arith.addf %240, %241 : vector<8x128xf32>
    %243 = arith.negf %242 : vector<8x128xf32>
    %244 = math.exp %243 : vector<8x128xf32>
    %cst_56 = arith.constant 1.000000e+00 : f32
    %245 = vector.broadcast %cst_56 : f32 to vector<8x128xf32>
    %246 = arith.addf %245, %244 : vector<8x128xf32>
    %247 = arith.divf %245, %246 : vector<8x128xf32>
    %248 = vector.extract_strided_slice %237 {offsets = [0, 128], sizes = [8, 128], strides = [1, 1]} : vector<8x384xf32> to vector<8x128xf32>
    %249 = vector.extract_strided_slice %239 {offsets = [0, 128], sizes = [8, 128], strides = [1, 1]} : vector<8x384xf32> to vector<8x128xf32>
    %250 = arith.addf %248, %249 : vector<8x128xf32>
    %251 = arith.negf %250 : vector<8x128xf32>
    %252 = math.exp %251 : vector<8x128xf32>
    %cst_57 = arith.constant 1.000000e+00 : f32
    %253 = vector.broadcast %cst_57 : f32 to vector<8x128xf32>
    %254 = arith.addf %253, %252 : vector<8x128xf32>
    %255 = arith.divf %253, %254 : vector<8x128xf32>
    %256 = vector.extract_strided_slice %237 {offsets = [0, 256], sizes = [8, 128], strides = [1, 1]} : vector<8x384xf32> to vector<8x128xf32>
    %257 = vector.extract_strided_slice %239 {offsets = [0, 256], sizes = [8, 128], strides = [1, 1]} : vector<8x384xf32> to vector<8x128xf32>
    %258 = arith.mulf %247, %257 : vector<8x128xf32>
    %259 = arith.addf %256, %258 : vector<8x128xf32>
    %260 = math.tanh %259 : vector<8x128xf32>
    %cst_58 = arith.constant 1.000000e+00 : f32
    %261 = vector.broadcast %cst_58 : f32 to vector<8x128xf32>
    %262 = arith.subf %261, %255 : vector<8x128xf32>
    %263 = arith.mulf %262, %260 : vector<8x128xf32>
    %264 = arith.mulf %255, %226 : vector<8x128xf32>
    %265 = arith.addf %263, %264 : vector<8x128xf32>
    %266 = arith.addi %8, %c5_i32 : i32
    %267 = vector.broadcast %266 : i32 to vector<8x1xi32>
    %268 = arith.cmpi slt, %267, %7 : vector<8x1xi32>
    %269 = vector.shape_cast %268 : vector<8x1xi1> to vector<8x1xi1>
    %270 = vector.broadcast %269 : vector<8x1xi1> to vector<8x128xi1>
    %271 = arith.select %270, %265, %226 : vector<8x128xi1>, vector<8x128xf32>
    %cst_59 = arith.constant 0.000000e+00 : f32
    %272 = vector.shape_cast %268 : vector<8x1xi1> to vector<8x1xi1>
    %273 = vector.broadcast %272 : vector<8x1xi1> to vector<8x128xi1>
    %274 = vector.broadcast %cst_59 : f32 to vector<8x128xf32>
    %275 = arith.select %273, %271, %274 : vector<8x128xi1>, vector<8x128xf32>
    %276 = arith.index_cast %c5_i32 : i32 to index
    %c0_60 = arith.constant 0 : index
    %c0_61 = arith.constant 0 : index
    %277 = vector.load %arg6[%276, %c0_60, %c0_61] : memref<8x8x128xf32, #tpu.memory_space<vmem>>, vector<1x8x128xf32>
    %278 = vector.shape_cast %277 : vector<1x8x128xf32> to vector<8x128xf32>
    %279 = vector.shape_cast %275 : vector<8x128xf32> to vector<1x8x128xf32>
    tpu.vector_store %arg6[%276, %c0_60, %c0_61], %279 {strides = array<i32>} : memref<8x8x128xf32, #tpu.memory_space<vmem>>, vector<1x8x128xf32>,
    %c6_i32 = arith.constant 6 : i32
    %280 = arith.index_cast %c6_i32 : i32 to index
    %c0_62 = arith.constant 0 : index
    %c0_63 = arith.constant 0 : index
    %281 = vector.load %arg2[%280, %c0_62, %c0_63] : memref<8x8x384xf32, #tpu.memory_space<vmem>>, vector<1x8x384xf32>
    %282 = vector.shape_cast %281 : vector<1x8x384xf32> to vector<8x384xf32>
    %cst_64 = arith.constant dense<0.000000e+00> : vector<8x384xf32>
    %283 = tpu.matmul %271, %3, %cst_64 {dimension_numbers = #tpu.dot_dimension_numbers<[1], [0], [0], [1], [0, 0, 1, 1], [], []>} : vector<8x128xf32>, vector<128x384xf32>, vector<8x384xf32> -> vector<8x384xf32>
    %284 = arith.addf %283, %6 : vector<8x384xf32>
    %285 = vector.extract_strided_slice %282 {offsets = [0, 0], sizes = [8, 128], strides = [1, 1]} : vector<8x384xf32> to vector<8x128xf32>
    %286 = vector.extract_strided_slice %284 {offsets = [0, 0], sizes = [8, 128], strides = [1, 1]} : vector<8x384xf32> to vector<8x128xf32>
    %287 = arith.addf %285, %286 : vector<8x128xf32>
    %288 = arith.negf %287 : vector<8x128xf32>
    %289 = math.exp %288 : vector<8x128xf32>
    %cst_65 = arith.constant 1.000000e+00 : f32
    %290 = vector.broadcast %cst_65 : f32 to vector<8x128xf32>
    %291 = arith.addf %290, %289 : vector<8x128xf32>
    %292 = arith.divf %290, %291 : vector<8x128xf32>
    %293 = vector.extract_strided_slice %282 {offsets = [0, 128], sizes = [8, 128], strides = [1, 1]} : vector<8x384xf32> to vector<8x128xf32>
    %294 = vector.extract_strided_slice %284 {offsets = [0, 128], sizes = [8, 128], strides = [1, 1]} : vector<8x384xf32> to vector<8x128xf32>
    %295 = arith.addf %293, %294 : vector<8x128xf32>
    %296 = arith.negf %295 : vector<8x128xf32>
    %297 = math.exp %296 : vector<8x128xf32>
    %cst_66 = arith.constant 1.000000e+00 : f32
    %298 = vector.broadcast %cst_66 : f32 to vector<8x128xf32>
    %299 = arith.addf %298, %297 : vector<8x128xf32>
    %300 = arith.divf %298, %299 : vector<8x128xf32>
    %301 = vector.extract_strided_slice %282 {offsets = [0, 256], sizes = [8, 128], strides = [1, 1]} : vector<8x384xf32> to vector<8x128xf32>
    %302 = vector.extract_strided_slice %284 {offsets = [0, 256], sizes = [8, 128], strides = [1, 1]} : vector<8x384xf32> to vector<8x128xf32>
    %303 = arith.mulf %292, %302 : vector<8x128xf32>
    %304 = arith.addf %301, %303 : vector<8x128xf32>
    %305 = math.tanh %304 : vector<8x128xf32>
    %cst_67 = arith.constant 1.000000e+00 : f32
    %306 = vector.broadcast %cst_67 : f32 to vector<8x128xf32>
    %307 = arith.subf %306, %300 : vector<8x128xf32>
    %308 = arith.mulf %307, %305 : vector<8x128xf32>
    %309 = arith.mulf %300, %271 : vector<8x128xf32>
    %310 = arith.addf %308, %309 : vector<8x128xf32>
    %311 = arith.addi %8, %c6_i32 : i32
    %312 = vector.broadcast %311 : i32 to vector<8x1xi32>
    %313 = arith.cmpi slt, %312, %7 : vector<8x1xi32>
    %314 = vector.shape_cast %313 : vector<8x1xi1> to vector<8x1xi1>
    %315 = vector.broadcast %314 : vector<8x1xi1> to vector<8x128xi1>
    %316 = arith.select %315, %310, %271 : vector<8x128xi1>, vector<8x128xf32>
    %cst_68 = arith.constant 0.000000e+00 : f32
    %317 = vector.shape_cast %313 : vector<8x1xi1> to vector<8x1xi1>
    %318 = vector.broadcast %317 : vector<8x1xi1> to vector<8x128xi1>
    %319 = vector.broadcast %cst_68 : f32 to vector<8x128xf32>
    %320 = arith.select %318, %316, %319 : vector<8x128xi1>, vector<8x128xf32>
    %321 = arith.index_cast %c6_i32 : i32 to index
    %c0_69 = arith.constant 0 : index
    %c0_70 = arith.constant 0 : index
    %322 = vector.load %arg6[%321, %c0_69, %c0_70] : memref<8x8x128xf32, #tpu.memory_space<vmem>>, vector<1x8x128xf32>
    %323 = vector.shape_cast %322 : vector<1x8x128xf32> to vector<8x128xf32>
    %324 = vector.shape_cast %320 : vector<8x128xf32> to vector<1x8x128xf32>
    tpu.vector_store %arg6[%321, %c0_69, %c0_70], %324 {strides = array<i32>} : memref<8x8x128xf32, #tpu.memory_space<vmem>>, vector<1x8x128xf32>,
    %c7_i32 = arith.constant 7 : i32
    %325 = arith.index_cast %c7_i32 : i32 to index
    %c0_71 = arith.constant 0 : index
    %c0_72 = arith.constant 0 : index
    %326 = vector.load %arg2[%325, %c0_71, %c0_72] : memref<8x8x384xf32, #tpu.memory_space<vmem>>, vector<1x8x384xf32>
    %327 = vector.shape_cast %326 : vector<1x8x384xf32> to vector<8x384xf32>
    %cst_73 = arith.constant dense<0.000000e+00> : vector<8x384xf32>
    %328 = tpu.matmul %316, %3, %cst_73 {dimension_numbers = #tpu.dot_dimension_numbers<[1], [0], [0], [1], [0, 0, 1, 1], [], []>} : vector<8x128xf32>, vector<128x384xf32>, vector<8x384xf32> -> vector<8x384xf32>
    %329 = arith.addf %328, %6 : vector<8x384xf32>
    %330 = vector.extract_strided_slice %327 {offsets = [0, 0], sizes = [8, 128], strides = [1, 1]} : vector<8x384xf32> to vector<8x128xf32>
    %331 = vector.extract_strided_slice %329 {offsets = [0, 0], sizes = [8, 128], strides = [1, 1]} : vector<8x384xf32> to vector<8x128xf32>
    %332 = arith.addf %330, %331 : vector<8x128xf32>
    %333 = arith.negf %332 : vector<8x128xf32>
    %334 = math.exp %333 : vector<8x128xf32>
    %cst_74 = arith.constant 1.000000e+00 : f32
    %335 = vector.broadcast %cst_74 : f32 to vector<8x128xf32>
    %336 = arith.addf %335, %334 : vector<8x128xf32>
    %337 = arith.divf %335, %336 : vector<8x128xf32>
    %338 = vector.extract_strided_slice %327 {offsets = [0, 128], sizes = [8, 128], strides = [1, 1]} : vector<8x384xf32> to vector<8x128xf32>
    %339 = vector.extract_strided_slice %329 {offsets = [0, 128], sizes = [8, 128], strides = [1, 1]} : vector<8x384xf32> to vector<8x128xf32>
    %340 = arith.addf %338, %339 : vector<8x128xf32>
    %341 = arith.negf %340 : vector<8x128xf32>
    %342 = math.exp %341 : vector<8x128xf32>
    %cst_75 = arith.constant 1.000000e+00 : f32
    %343 = vector.broadcast %cst_75 : f32 to vector<8x128xf32>
    %344 = arith.addf %343, %342 : vector<8x128xf32>
    %345 = arith.divf %343, %344 : vector<8x128xf32>
    %346 = vector.extract_strided_slice %327 {offsets = [0, 256], sizes = [8, 128], strides = [1, 1]} : vector<8x384xf32> to vector<8x128xf32>
    %347 = vector.extract_strided_slice %329 {offsets = [0, 256], sizes = [8, 128], strides = [1, 1]} : vector<8x384xf32> to vector<8x128xf32>
    %348 = arith.mulf %337, %347 : vector<8x128xf32>
    %349 = arith.addf %346, %348 : vector<8x128xf32>
    %350 = math.tanh %349 : vector<8x128xf32>
    %cst_76 = arith.constant 1.000000e+00 : f32
    %351 = vector.broadcast %cst_76 : f32 to vector<8x128xf32>
    %352 = arith.subf %351, %345 : vector<8x128xf32>
    %353 = arith.mulf %352, %350 : vector<8x128xf32>
    %354 = arith.mulf %345, %316 : vector<8x128xf32>
    %355 = arith.addf %353, %354 : vector<8x128xf32>
    %356 = arith.addi %8, %c7_i32 : i32
    %357 = vector.broadcast %356 : i32 to vector<8x1xi32>
    %358 = arith.cmpi slt, %357, %7 : vector<8x1xi32>
    %359 = vector.shape_cast %358 : vector<8x1xi1> to vector<8x1xi1>
    %360 = vector.broadcast %359 : vector<8x1xi1> to vector<8x128xi1>
    %361 = arith.select %360, %355, %316 : vector<8x128xi1>, vector<8x128xf32>
    %cst_77 = arith.constant 0.000000e+00 : f32
    %362 = vector.shape_cast %358 : vector<8x1xi1> to vector<8x1xi1>
    %363 = vector.broadcast %362 : vector<8x1xi1> to vector<8x128xi1>
    %364 = vector.broadcast %cst_77 : f32 to vector<8x128xf32>
    %365 = arith.select %363, %361, %364 : vector<8x128xi1>, vector<8x128xf32>
    %366 = arith.index_cast %c7_i32 : i32 to index
    %c0_78 = arith.constant 0 : index
    %c0_79 = arith.constant 0 : index
    %367 = vector.load %arg6[%366, %c0_78, %c0_79] : memref<8x8x128xf32, #tpu.memory_space<vmem>>, vector<1x8x128xf32>
    %368 = vector.shape_cast %367 : vector<1x8x128xf32> to vector<8x128xf32>
    %369 = vector.shape_cast %365 : vector<8x128xf32> to vector<1x8x128xf32>
    tpu.vector_store %arg6[%366, %c0_78, %c0_79], %369 {strides = array<i32>} : memref<8x8x128xf32, #tpu.memory_space<vmem>>, vector<1x8x128xf32>,
    %c8_i32_80 = arith.constant 8 : i32
    %c0_81 = arith.constant 0 : index
    %c0_82 = arith.constant 0 : index
    %370 = vector.load %arg7[%c0_81, %c0_82] : memref<8x128xf32, #tpu.memory_space<vmem>>, vector<8x128xf32>
    tpu.vector_store %arg7[%c0_81, %c0_82], %361 {strides = array<i32>} : memref<8x128xf32, #tpu.memory_space<vmem>>, vector<8x128xf32>,
    return
  }
  func.func @transform_0(%arg0: i32, %arg1: i32) -> (i32, i32, i32) {
    %c0_i32 = arith.constant 0 : i32
    %c0_i32_0 = arith.constant 0 : i32
    return %arg1, %arg0, %c0_i32 : i32, i32, i32
  }
  func.func @transform_1(%arg0: i32, %arg1: i32) -> (i32, i32) {
    %c0_i32 = arith.constant 0 : i32
    %c0_i32_0 = arith.constant 0 : i32
    return %arg0, %c0_i32 : i32, i32
  }
  func.func @transform_2(%arg0: i32, %arg1: i32) -> (i32, i32) {
    %c0_i32 = arith.constant 0 : i32
    %c0_i32_0 = arith.constant 0 : i32
    %c0_i32_1 = arith.constant 0 : i32
    return %c0_i32, %c0_i32_0 : i32, i32
  }
  func.func @transform_3(%arg0: i32, %arg1: i32) -> (i32, i32) {
    %c0_i32 = arith.constant 0 : i32
    %c0_i32_0 = arith.constant 0 : i32
    %c0_i32_1 = arith.constant 0 : i32
    return %c0_i32, %c0_i32_0 : i32, i32
  }
  func.func @transform_4(%arg0: i32, %arg1: i32) -> (i32, i32, i32) {
    %c0_i32 = arith.constant 0 : i32
    %c0_i32_0 = arith.constant 0 : i32
    return %arg1, %arg0, %c0_i32 : i32, i32, i32
  }
}

</mosaic_0001>

<llo_original>
// kernel: tpu_custom_call.1
$region0: #{tpu_custom_call.1}
  #allocation0 [shape = 'u32[]', space=smem, size = 0x4, offset = 0x4, fixed_abs, tag = 'smem constant byte address 0x4 - core index']
  #allocation1 [shape = 'u32[144,128]{1,0:T(1,128)}', space=vmem, size = 0x12000, scoped, tag = 'internal scratch']
  #allocation2 [shape = 'f32[8,128]{1,0:T(8,128)}', space=vmem, size = 0x1000, scoped, tag = 'scratch operand']
  %s0 = inlined_call_operand.hbm [shape: f32[8,8,384], index: 0, kind: input, shape index: {}]
  %s1 = inlined_call_operand.vmem [shape: s32[8,1], index: 1, kind: input, shape index: {}]
  %s2 = inlined_call_operand.hbm [shape: f32[128,384], index: 2, kind: input, shape index: {}]
  %s3 = inlined_call_operand.vmem [shape: f32[1,384], index: 3, kind: input, shape index: {}]
  %s4 = inlined_call_operand.hbm [shape: f32[8,8,128], index: 4, kind: output, shape index: {}]
  %s5 = sld [smem:[#allocation0]]
  $region38: #{tpu_custom_call.1} parent=0
    _
  %s7 = ssub.s32 1, %s5
  %s8 = scalar_select 0, %s7, %s5
  $region1: #{tpu_custom_call.1} parent=0
    #allocation3 [shape = 'u8[98304]{0}', space=vmem, size = 0x18000, scoped, tag = 'input window, operand 0, single buffered']
    #allocation4 [shape = 's32[1]{0}', space=sflag, size = 0x4, scoped, tag = 'scoped memory for tpu_custom_call.1']
    #allocation5 [shape = 's32[1]{0}', space=sflag, size = 0x4, scoped, tag = 'scoped memory for tpu_custom_call.1']
    #allocation6 [shape = 'u8[196608]{0}', space=vmem, size = 0x30000, scoped, tag = 'input window, operand 2, single buffered']
    #allocation7 [shape = 's32[1]{0}', space=sflag, size = 0x4, scoped, tag = 'scoped memory for tpu_custom_call.1']
    #allocation8 [shape = 'u8[32768]{0}', space=vmem, size = 0x8000, scoped, tag = 'output window, operand 0, single buffered']
    %9 = vsyncpa [#allocation4], 0
    %10 = vsyncpa [#allocation7], 0
    %11 = vsyncpa [#allocation5], 0
    // Predicated region
    $region2: #{tpu_custom_call.1} parent=1 // pred_check
      _
    $region3: #{tpu_custom_call.1} parent=1 // pred_check_branch
      %13 = sbr.rel (0) target = $region5
    $region4: #{tpu_custom_call.1} parent=1 // pred_region
      %s15 = ssub.s32 3072, 3072
      %16 = vsyncadd [#allocation4], %s15
      %s17 = sshll.u32 [#allocation3], 4
      %s18 = int_to_ptr.vmem [resolvable:$true] %s17
      %23 = dma.hbm_to_vmem [thread:$0]  %s0, 3072, %s18, [#allocation4], 384, 384, 24
    $region5: #{tpu_custom_call.1} parent=1 // pred_fallthru
      _
    // Predicated region
    $region6: #{tpu_custom_call.1} parent=1 // pred_check
      _
    $region7: #{tpu_custom_call.1} parent=1 // pred_check_branch
      %25 = sbr.rel (0) target = $region9
    $region8: #{tpu_custom_call.1} parent=1 // pred_region
      _
    $region9: #{tpu_custom_call.1} parent=1 // pred_fallthru
      _
    // Predicated region
    $region10: #{tpu_custom_call.1} parent=1 // pred_check
      _
    $region11: #{tpu_custom_call.1} parent=1 // pred_check_branch
      %27 = sbr.rel (0) target = $region13
    $region12: #{tpu_custom_call.1} parent=1 // pred_region
      %s29 = ssub.s32 6144, 6144
      %30 = vsyncadd [#allocation7], %s29
      %s31 = sshll.u32 [#allocation6], 4
      %s32 = int_to_ptr.vmem [resolvable:$true] %s31
      %37 = dma.hbm_to_vmem [thread:$0]  %s2, 6144, %s32, [#allocation7], 384, 384, 24
    $region13: #{tpu_custom_call.1} parent=1 // pred_fallthru
      _
    // Predicated region
    $region14: #{tpu_custom_call.1} parent=1 // pred_check
      _
    $region15: #{tpu_custom_call.1} parent=1 // pred_check_branch
      %39 = sbr.rel (0) target = $region17
    $region16: #{tpu_custom_call.1} parent=1 // pred_region
      _
    $region17: #{tpu_custom_call.1} parent=1 // pred_fallthru
      _
    // Predicated region
    $region18: #{tpu_custom_call.1} parent=1 // pred_check
      _
    $region19: #{tpu_custom_call.1} parent=1 // pred_check_branch
      %41 = sbr.rel (0) target = $region21
    $region20: #{tpu_custom_call.1} parent=1 // pred_region
      %42 = dma.done [#allocation4], 3072
    $region21: #{tpu_custom_call.1} parent=1 // pred_fallthru
      _
    // Predicated region
    $region22: #{tpu_custom_call.1} parent=1 // pred_check
      _
    $region23: #{tpu_custom_call.1} parent=1 // pred_check_branch
      %44 = sbr.rel (0) target = $region25
    $region24: #{tpu_custom_call.1} parent=1 // pred_region
      %45 = dma.done [#allocation7], 6144
    $region25: #{tpu_custom_call.1} parent=1 // pred_fallthru
      _
    %p46 = scmp.eq.s32.totalorder 0, 0
    // Predicated region
    $region26: #{tpu_custom_call.1} parent=1 // pred_check
      %p47 = pneg %p46
    $region27: #{tpu_custom_call.1} parent=1 // pred_check_branch
      %49 = sbr.rel (%p47) target = $region29
    $region28: #{tpu_custom_call.1} parent=1 // pred_region
      %50 = vst [vmem:[#allocation2] sm:$0xff] 0.0
    $region29: #{tpu_custom_call.1} parent=1 // pred_fallthru
      _
    %v51 = vld [vmem:[#allocation6] sm:$0xff]
    %v52 = vld [vmem:[#allocation6 + $0x8] sm:$0xff]
    %v53 = vld [vmem:[#allocation6 + $0x10] sm:$0xff]
    %v54 = vld [vmem:[#allocation6 + $0x18] sm:$0xff]
    %v55 = vld [vmem:[#allocation6 + $0x20] sm:$0xff]
    %v56 = vld [vmem:[#allocation6 + $0x28] sm:$0xff]
    %v57 = vld [vmem:[#allocation6 + $0x30] sm:$0xff]
    %v58 = vld [vmem:[#allocation6 + $0x38] sm:$0xff]
    %v59 = vld [vmem:[#allocation6 + $0x40] sm:$0xff]
    %v60 = vld [vmem:[#allocation6 + $0x48] sm:$0xff]
    %v61 = vld [vmem:[#allocation6 + $0x50] sm:$0xff]
    %v62 = vld [vmem:[#allocation6 + $0x58] sm:$0xff]
    %v63 = vld [vmem:[#allocation6 + $0x60] sm:$0xff]
    %v64 = vld [vmem:[#allocation6 + $0x68] sm:$0xff]
    %v65 = vld [vmem:[#allocation6 + $0x70] sm:$0xff]
    %v66 = vld [vmem:[#allocation6 + $0x78] sm:$0xff]
    %v67 = vld [vmem:[#allocation6 + $0x80] sm:$0xff]
    %v68 = vld [vmem:[#allocation6 + $0x88] sm:$0xff]
    %v69 = vld [vmem:[#allocation6 + $0x90] sm:$0xff]
    %v70 = vld [vmem:[#allocation6 + $0x98] sm:$0xff]
    %v71 = vld [vmem:[#allocation6 + $0xa0] sm:$0xff]
    %v72 = vld [vmem:[#allocation6 + $0xa8] sm:$0xff]
    %v73 = vld [vmem:[#allocation6 + $0xb0] sm:$0xff]
    %v74 = vld [vmem:[#allocation6 + $0xb8] sm:$0xff]
    %v75 = vld [vmem:[#allocation6 + $0xc0] sm:$0xff]
    %v76 = vld [vmem:[#allocation6 + $0xc8] sm:$0xff]
    %v77 = vld [vmem:[#allocation6 + $0xd0] sm:$0xff]
    %v78 = vld [vmem:[#allocation6 + $0xd8] sm:$0xff]
    %v79 = vld [vmem:[#allocation6 + $0xe0] sm:$0xff]
    %v80 = vld [vmem:[#allocation6 + $0xe8] sm:$0xff]
    %v81 = vld [vmem:[#allocation6 + $0xf0] sm:$0xff]
    %v82 = vld [vmem:[#allocation6 + $0xf8] sm:$0xff]
    %v83 = vld [vmem:[#allocation6 + $0x100] sm:$0xff]
    %v84 = vld [vmem:[#allocation6 + $0x108] sm:$0xff]
    %v85 = vld [vmem:[#allocation6 + $0x110] sm:$0xff]
    %v86 = vld [vmem:[#allocation6 + $0x118] sm:$0xff]
    %v87 = vld [vmem:[#allocation6 + $0x120] sm:$0xff]
    %v88 = vld [vmem:[#allocation6 + $0x128] sm:$0xff]
    %v89 = vld [vmem:[#allocation6 + $0x130] sm:$0xff]
    %v90 = vld [vmem:[#allocation6 + $0x138] sm:$0xff]
    %v91 = vld [vmem:[#allocation6 + $0x140] sm:$0xff]
    %v92 = vld [vmem:[#allocation6 + $0x148] sm:$0xff]
    %v93 = vld [vmem:[#allocation6 + $0x150] sm:$0xff]
    %v94 = vld [vmem:[#allocation6 + $0x158] sm:$0xff]
    %v95 = vld [vmem:[#allocation6 + $0x160] sm:$0xff]
    %v96 = vld [vmem:[#allocation6 + $0x168] sm:$0xff]
    %v97 = vld [vmem:[#allocation6 + $0x170] sm:$0xff]
    %v98 = vld [vmem:[#allocation6 + $0x178] sm:$0xff]
    %v99 = vld [vmem:[%s3] sm:$0x7]
    %v101 = vlaneseq
    %v102 = vshrl.u32 %v101, 7
    %v103 = vsub.s32 0, %v102
    %v104 = vrot.slane %v99, %v103
    %v105 = vlaneseq
    %v106 = vshrl.u32 %v105, 7
    %v107 = vsub.s32 1, %v106
    %v108 = vrot.slane %v99, %v107
    %v109 = vlaneseq
    %v110 = vshrl.u32 %v109, 7
    %v111 = vsub.s32 2, %v110
    %v112 = vrot.slane %v99, %v111
    %v116 = vld [vmem:[%s1] sm:$0xff]
    %s117 = smul.u32 0, 8
    %v118 = vld [vmem:[#allocation2] sm:$0xff]
    %v119 = vld [vmem:[#allocation3] sm:$0xff]
    %v120 = vld [vmem:[#allocation3 + $0x8] sm:$0xff]
    %v121 = vld [vmem:[#allocation3 + $0x10] sm:$0xff]
    %122 = vmatprep.subr.mxu0 %v52
    %123 = vmatpush1.msra.mxu0 %v51
    %124 = vmatprep.subr.mxu0 %v55
    %125 = vmatpush1.msra.mxu0 %v54
    %126 = vmatprep.subr.mxu0 %v58
    %127 = vmatpush1.msra.mxu0 %v57
    %128 = vmatprep.subr.mxu0 %v61
    %129 = vmatpush1.msra.mxu0 %v60
    %130 = vmatprep.subr.mxu0 %v64
    %131 = vmatpush1.msra.mxu0 %v63
    %132 = vmatprep.subr.mxu0 %v67
    %133 = vmatpush1.msra.mxu0 %v66
    %134 = vmatprep.subr.mxu0 %v70
    %135 = vmatpush1.msra.mxu0 %v69
    %136 = vmatprep.subr.mxu0 %v73
    %137 = vmatpush1.msra.mxu0 %v72
    %138 = vmatprep.subr.mxu0 %v76
    %139 = vmatpush1.msra.mxu0 %v75
    %140 = vmatprep.subr.mxu0 %v79
    %141 = vmatpush1.msra.mxu0 %v78
    %142 = vmatprep.subr.mxu0 %v82
    %143 = vmatpush1.msra.mxu0 %v81
    %144 = vmatprep.subr.mxu0 %v85
    %145 = vmatpush1.msra.mxu0 %v84
    %146 = vmatprep.subr.mxu0 %v88
    %147 = vmatpush1.msra.mxu0 %v87
    %148 = vmatprep.subr.mxu0 %v91
    %149 = vmatpush1.msra.mxu0 %v90
    %150 = vmatprep.subr.mxu0 %v94
    %151 = vmatpush1.msra.mxu0 %v93
    %152 = vmatprep.subr.mxu0 %v97
    %153 = vmatpush1.msra.mxu0 %v96
    %154 = vmatprep.subr.mxu0 0.0
    %155 = vmatpush1.msra.mxu0 0.0
    %156 = vmatprep.subr.mxu0 0.0
    %157 = vmatpush1.msra.mxu0 0.0
    %158 = vmatprep.subr.mxu0 0.0
    %159 = vmatpush1.msra.mxu0 0.0
    %160 = vmatprep.subr.mxu0 0.0
    %161 = vmatpush1.msra.mxu0 0.0
    %162 = vmatprep.subr.mxu0 0.0
    %163 = vmatpush1.msra.mxu0 0.0
    %164 = vmatprep.subr.mxu0 0.0
    %165 = vmatpush1.msra.mxu0 0.0
    %166 = vmatprep.subr.mxu0 0.0
    %167 = vmatpush1.msra.mxu0 0.0
    %168 = vmatprep.subr.mxu0 0.0
    %169 = vmatpush1.msra.mxu0 0.0
    %170 = vmatprep.subr.mxu0 0.0
    %171 = vmatpush1.msra.mxu0 0.0
    %172 = vmatprep.subr.mxu0 0.0
    %173 = vmatpush1.msra.mxu0 0.0
    %174 = vmatprep.subr.mxu0 0.0
    %175 = vmatpush1.msra.mxu0 0.0
    %176 = vmatprep.subr.mxu0 0.0
    %177 = vmatpush1.msra.mxu0 0.0
    %178 = vmatprep.subr.mxu0 0.0
    %179 = vmatpush1.msra.mxu0 0.0
    %180 = vmatprep.subr.mxu0 0.0
    %181 = vmatpush1.msra.mxu0 0.0
    %182 = vmatprep.subr.mxu0 0.0
    %183 = vmatpush1.msra.mxu0 0.0
    %184 = vmatprep.subr.mxu0 0.0
    %185 = vmatpush1.msra.mxu0 0.0
    %186 = vmatprep.mubr.f32.mxu0 0.0
    %187 = vmatmul.mubr.f32.gmra.mrb[0].mxu0 %v118
    %v188 = vpop.f32.mrb[0].mxu0
    %v189 = vadd.f32 %v104, %v188
    %v190 = vpop.f32.mrb[0].mxu0
    %v191 = vadd.f32 %v108, %v190
    %192 = vdwg.mxu0
    %193 = vmatprep.subr.mxu0 0.0
    %194 = vmatpush1.msra.mxu0 %v53
    %195 = vmatprep.subr.mxu0 0.0
    %196 = vmatpush1.msra.mxu0 %v56
    %197 = vmatprep.subr.mxu0 0.0
    %198 = vmatpush1.msra.mxu0 %v59
    %199 = vmatprep.subr.mxu0 0.0
    %200 = vmatpush1.msra.mxu0 %v62
    %201 = vmatprep.subr.mxu0 0.0
    %202 = vmatpush1.msra.mxu0 %v65
    %203 = vmatprep.subr.mxu0 0.0
    %204 = vmatpush1.msra.mxu0 %v68
    %205 = vmatprep.subr.mxu0 0.0
    %206 = vmatpush1.msra.mxu0 %v71
    %207 = vmatprep.subr.mxu0 0.0
    %208 = vmatpush1.msra.mxu0 %v74
    %209 = vmatprep.subr.mxu0 0.0
    %210 = vmatpush1.msra.mxu0 %v77
    %211 = vmatprep.subr.mxu0 0.0
    %212 = vmatpush1.msra.mxu0 %v80
    %213 = vmatprep.subr.mxu0 0.0
    %214 = vmatpush1.msra.mxu0 %v83
    %215 = vmatprep.subr.mxu0 0.0
    %216 = vmatpush1.msra.mxu0 %v86
    %217 = vmatprep.subr.mxu0 0.0
    %218 = vmatpush1.msra.mxu0 %v89
    %219 = vmatprep.subr.mxu0 0.0
    %220 = vmatpush1.msra.mxu0 %v92
    %221 = vmatprep.subr.mxu0 0.0
    %222 = vmatpush1.msra.mxu0 %v95
    %223 = vmatprep.subr.mxu0 0.0
    %224 = vmatpush1.msra.mxu0 %v98
    %225 = vmatprep.subr.mxu0 0.0
    %226 = vmatpush1.msra.mxu0 0.0
    %227 = vmatprep.subr.mxu0 0.0
    %228 = vmatpush1.msra.mxu0 0.0
    %229 = vmatprep.subr.mxu0 0.0
    %230 = vmatpush1.msra.mxu0 0.0
    %231 = vmatprep.subr.mxu0 0.0
    %232 = vmatpush1.msra.mxu0 0.0
    %233 = vmatprep.subr.mxu0 0.0
    %234 = vmatpush1.msra.mxu0 0.0
    %235 = vmatprep.subr.mxu0 0.0
    %236 = vmatpush1.msra.mxu0 0.0
    %237 = vmatprep.subr.mxu0 0.0
    %238 = vmatpush1.msra.mxu0 0.0
    %239 = vmatprep.subr.mxu0 0.0
    %240 = vmatpush1.msra.mxu0 0.0
    %241 = vmatprep.subr.mxu0 0.0
    %242 = vmatpush1.msra.mxu0 0.0
    %243 = vmatprep.subr.mxu0 0.0
    %244 = vmatpush1.msra.mxu0 0.0
    %245 = vmatprep.subr.mxu0 0.0
    %246 = vmatpush1.msra.mxu0 0.0
    %247 = vmatprep.subr.mxu0 0.0
    %248 = vmatpush1.msra.mxu0 0.0
    %249 = vmatprep.subr.mxu0 0.0
    %250 = vmatpush1.msra.mxu0 0.0
    %251 = vmatprep.subr.mxu0 0.0
    %252 = vmatpush1.msra.mxu0 0.0
    %253 = vmatprep.subr.mxu0 0.0
    %254 = vmatpush1.msra.mxu0 0.0
    %255 = vmatprep.subr.mxu0 0.0
    %256 = vmatpush1.msra.mxu0 0.0
    %257 = vmatprep.mubr.f32.mxu0 0.0
    %258 = vmatmul.mubr.f32.gmra.mrb[0].mxu0 %v118
    %v259 = vpop.f32.mrb[0].mxu0
    %v260 = vadd.f32 %v112, %v259
    %v261 = vpop.f32.mrb[0].mxu0
    %262 = vdwg.mxu0
    %v263 = vadd.f32 %v119, %v189
    %v264 = vxor.u32 %v263, 2147483648
    %v265 = vmul.f32 %v264, 1.442695
    %v266 = vpow.pop %v265
    %v267 = vadd.f32 %v266, 1.0
    %v268 = vrcp.pop %v267
    %v269 = vmul.f32 1.0, %v268
    %v270 = vadd.f32 %v120, %v191
    %v271 = vxor.u32 %v270, 2147483648
    %v272 = vmul.f32 %v271, 1.442695
    %v273 = vpow.pop %v272
    %v274 = vadd.f32 %v273, 1.0
    %v275 = vrcp.pop %v274
    %v276 = vmul.f32 1.0, %v275
    %v277 = vmul.f32 %v269, %v260
    %v278 = vadd.f32 %v121, %v277
    %v279 = vtanh.pop %v278
    %v280 = vsub.f32 1.0, %v276
    %v281 = vmul.f32 %v280, %v279
    %v282 = vmul.f32 %v276, %v118
    %v283 = vadd.f32 %v281, %v282
    %v284 = vstv %s117
    %vm285 = vcmp.lt.s32.totalorder %v284, %v116
    %v286 = vsel %vm285, 1, 0
    %287 = vset.pattern.permute.xlu0 0
    %288 = vperm.xlu0 %287, %v286
    %v289 = vpop.permute.xlu0 %288
    %vm290 = vcmp.eq.s32.totalorder %v289, 1
    %v291 = vsel %vm290, %v283, %v118
    %v292 = vsel %vm290, %v283, 0.0
    %293 = vst [vmem:[#allocation8] sm:$0xff] %v292
    %s294 = scalar_lea.vmem [#allocation3], 24
    %v295 = vld [vmem:[%s294] sm:$0xff]
    %v296 = vld [vmem:[%s294 + $0x8] sm:$0xff]
    %v297 = vld [vmem:[%s294 + $0x10] sm:$0xff]
    %298 = vmatprep.subr.mxu0 %v52
    %299 = vmatpush1.msra.mxu0 %v51
    %300 = vmatprep.subr.mxu0 %v55
    %301 = vmatpush1.msra.mxu0 %v54
    %302 = vmatprep.subr.mxu0 %v58
    %303 = vmatpush1.msra.mxu0 %v57
    %304 = vmatprep.subr.mxu0 %v61
    %305 = vmatpush1.msra.mxu0 %v60
    %306 = vmatprep.subr.mxu0 %v64
    %307 = vmatpush1.msra.mxu0 %v63
    %308 = vmatprep.subr.mxu0 %v67
    %309 = vmatpush1.msra.mxu0 %v66
    %310 = vmatprep.subr.mxu0 %v70
    %311 = vmatpush1.msra.mxu0 %v69
    %312 = vmatprep.subr.mxu0 %v73
    %313 = vmatpush1.msra.mxu0 %v72
    %314 = vmatprep.subr.mxu0 %v76
    %315 = vmatpush1.msra.mxu0 %v75
    %316 = vmatprep.subr.mxu0 %v79
    %317 = vmatpush1.msra.mxu0 %v78
    %318 = vmatprep.subr.mxu0 %v82
    %319 = vmatpush1.msra.mxu0 %v81
    %320 = vmatprep.subr.mxu0 %v85
    %321 = vmatpush1.msra.mxu0 %v84
    %322 = vmatprep.subr.mxu0 %v88
    %323 = vmatpush1.msra.mxu0 %v87
    %324 = vmatprep.subr.mxu0 %v91
    %325 = vmatpush1.msra.mxu0 %v90
    %326 = vmatprep.subr.mxu0 %v94
    %327 = vmatpush1.msra.mxu0 %v93
    %328 = vmatprep.subr.mxu0 %v97
    %329 = vmatpush1.msra.mxu0 %v96
    %330 = vmatprep.subr.mxu0 0.0
    %331 = vmatpush1.msra.mxu0 0.0
    %332 = vmatprep.subr.mxu0 0.0
    %333 = vmatpush1.msra.mxu0 0.0
    %334 = vmatprep.subr.mxu0 0.0
    %335 = vmatpush1.msra.mxu0 0.0
    %336 = vmatprep.subr.mxu0 0.0
    %337 = vmatpush1.msra.mxu0 0.0
    %338 = vmatprep.subr.mxu0 0.0
    %339 = vmatpush1.msra.mxu0 0.0
    %340 = vmatprep.subr.mxu0 0.0
    %341 = vmatpush1.msra.mxu0 0.0
    %342 = vmatprep.subr.mxu0 0.0
    %343 = vmatpush1.msra.mxu0 0.0
    %344 = vmatprep.subr.mxu0 0.0
    %345 = vmatpush1.msra.mxu0 0.0
    %346 = vmatprep.subr.mxu0 0.0
    %347 = vmatpush1.msra.mxu0 0.0
    %348 = vmatprep.subr.mxu0 0.0
    %349 = vmatpush1.msra.mxu0 0.0
    %350 = vmatprep.subr.mxu0 0.0
    %351 = vmatpush1.msra.mxu0 0.0
    %352 = vmatprep.subr.mxu0 0.0
    %353 = vmatpush1.msra.mxu0 0.0
    %354 = vmatprep.subr.mxu0 0.0
    %355 = vmatpush1.msra.mxu0 0.0
    %356 = vmatprep.subr.mxu0 0.0
    %357 = vmatpush1.msra.mxu0 0.0
    %358 = vmatprep.subr.mxu0 0.0
    %359 = vmatpush1.msra.mxu0 0.0
    %360 = vmatprep.subr.mxu0 0.0
    %361 = vmatpush1.msra.mxu0 0.0
    %362 = vmatprep.mubr.f32.mxu0 0.0
    %363 = vmatmul.mubr.f32.gmra.mrb[0].mxu0 %v291
    %v364 = vpop.f32.mrb[0].mxu0
    %v365 = vadd.f32 %v104, %v364
    %v366 = vpop.f32.mrb[0].mxu0
    %v367 = vadd.f32 %v108, %v366
    %368 = vdwg.mxu0
    %369 = vmatprep.subr.mxu0 0.0
    %370 = vmatpush1.msra.mxu0 %v53
    %371 = vmatprep.subr.mxu0 0.0
    %372 = vmatpush1.msra.mxu0 %v56
    %373 = vmatprep.subr.mxu0 0.0
    %374 = vmatpush1.msra.mxu0 %v59
    %375 = vmatprep.subr.mxu0 0.0
    %376 = vmatpush1.msra.mxu0 %v62
    %377 = vmatprep.subr.mxu0 0.0
    %378 = vmatpush1.msra.mxu0 %v65
    %379 = vmatprep.subr.mxu0 0.0
    %380 = vmatpush1.msra.mxu0 %v68
    %381 = vmatprep.subr.mxu0 0.0
    %382 = vmatpush1.msra.mxu0 %v71
    %383 = vmatprep.subr.mxu0 0.0
    %384 = vmatpush1.msra.mxu0 %v74
    %385 = vmatprep.subr.mxu0 0.0
    %386 = vmatpush1.msra.mxu0 %v77
    %387 = vmatprep.subr.mxu0 0.0
    %388 = vmatpush1.msra.mxu0 %v80
    %389 = vmatprep.subr.mxu0 0.0
    %390 = vmatpush1.msra.mxu0 %v83
    %391 = vmatprep.subr.mxu0 0.0
    %392 = vmatpush1.msra.mxu0 %v86
    %393 = vmatprep.subr.mxu0 0.0
    %394 = vmatpush1.msra.mxu0 %v89
    %395 = vmatprep.subr.mxu0 0.0
    %396 = vmatpush1.msra.mxu0 %v92
    %397 = vmatprep.subr.mxu0 0.0
    %398 = vmatpush1.msra.mxu0 %v95
    %399 = vmatprep.subr.mxu0 0.0
    %400 = vmatpush1.msra.mxu0 %v98
    %401 = vmatprep.subr.mxu0 0.0
    %402 = vmatpush1.msra.mxu0 0.0
    %403 = vmatprep.subr.mxu0 0.0
    %404 = vmatpush1.msra.mxu0 0.0
    %405 = vmatprep.subr.mxu0 0.0
    %406 = vmatpush1.msra.mxu0 0.0
    %407 = vmatprep.subr.mxu0 0.0
    %408 = vmatpush1.msra.mxu0 0.0
    %409 = vmatprep.subr.mxu0 0.0
    %410 = vmatpush1.msra.mxu0 0.0
    %411 = vmatprep.subr.mxu0 0.0
    %412 = vmatpush1.msra.mxu0 0.0
    %413 = vmatprep.subr.mxu0 0.0
    %414 = vmatpush1.msra.mxu0 0.0
    %415 = vmatprep.subr.mxu0 0.0
    %416 = vmatpush1.msra.mxu0 0.0
    %417 = vmatprep.subr.mxu0 0.0
    %418 = vmatpush1.msra.mxu0 0.0
    %419 = vmatprep.subr.mxu0 0.0
    %420 = vmatpush1.msra.mxu0 0.0
    %421 = vmatprep.subr.mxu0 0.0
    %422 = vmatpush1.msra.mxu0 0.0
    %423 = vmatprep.subr.mxu0 0.0
    %424 = vmatpush1.msra.mxu0 0.0
    %425 = vmatprep.subr.mxu0 0.0
    %426 = vmatpush1.msra.mxu0 0.0
    %427 = vmatprep.subr.mxu0 0.0
    %428 = vmatpush1.msra.mxu0 0.0
    %429 = vmatprep.subr.mxu0 0.0
    %430 = vmatpush1.msra.mxu0 0.0
    %431 = vmatprep.subr.mxu0 0.0
    %432 = vmatpush1.msra.mxu0 0.0
    %433 = vmatprep.mubr.f32.mxu0 0.0
    %434 = vmatmul.mubr.f32.gmra.mrb[0].mxu0 %v291
    %v435 = vpop.f32.mrb[0].mxu0
    %v436 = vadd.f32 %v112, %v435
    %v437 = vpop.f32.mrb[0].mxu0
    %438 = vdwg.mxu0
    %v439 = vadd.f32 %v295, %v365
    %v440 = vxor.u32 %v439, 2147483648
    %v441 = vmul.f32 %v440, 1.442695
    %v442 = vpow.pop %v441
    %v443 = vadd.f32 %v442, 1.0
    %v444 = vrcp.pop %v443
    %v445 = vmul.f32 1.0, %v444
    %v446 = vadd.f32 %v296, %v367
    %v447 = vxor.u32 %v446, 2147483648
    %v448 = vmul.f32 %v447, 1.442695
    %v449 = vpow.pop %v448
    %v450 = vadd.f32 %v449, 1.0
    %v451 = vrcp.pop %v450
    %v452 = vmul.f32 1.0, %v451
    %v453 = vmul.f32 %v445, %v436
    %v454 = vadd.f32 %v297, %v453
    %v455 = vtanh.pop %v454
    %v456 = vsub.f32 1.0, %v452
    %v457 = vmul.f32 %v456, %v455
    %v458 = vmul.f32 %v452, %v291
    %v459 = vadd.f32 %v457, %v458
    %s460 = sadd.s32 %s117, 1
    %v461 = vstv %s460
    %vm462 = vcmp.lt.s32.totalorder %v461, %v116
    %v463 = vsel %vm462, 1, 0
    %464 = vset.pattern.permute.xlu0 0
    %465 = vperm.xlu0 %464, %v463
    %v466 = vpop.permute.xlu0 %465
    %vm467 = vcmp.eq.s32.totalorder %v466, 1
    %v468 = vsel %vm467, %v459, %v291
    %v469 = vsel %vm467, %v459, 0.0
    %s470 = scalar_lea.vmem [#allocation8], 8
    %471 = vst [vmem:[%s470] sm:$0xff] %v469
    %s472 = scalar_lea.vmem [#allocation3], 48
    %v473 = vld [vmem:[%s472] sm:$0xff]
    %v474 = vld [vmem:[%s472 + $0x8] sm:$0xff]
    %v475 = vld [vmem:[%s472 + $0x10] sm:$0xff]
    %476 = vmatprep.subr.mxu0 %v52
    %477 = vmatpush1.msra.mxu0 %v51
    %478 = vmatprep.subr.mxu0 %v55
    %479 = vmatpush1.msra.mxu0 %v54
    %480 = vmatprep.subr.mxu0 %v58
    %481 = vmatpush1.msra.mxu0 %v57
    %482 = vmatprep.subr.mxu0 %v61
    %483 = vmatpush1.msra.mxu0 %v60
    %484 = vmatprep.subr.mxu0 %v64
    %485 = vmatpush1.msra.mxu0 %v63
    %486 = vmatprep.subr.mxu0 %v67
    %487 = vmatpush1.msra.mxu0 %v66
    %488 = vmatprep.subr.mxu0 %v70
    %489 = vmatpush1.msra.mxu0 %v69
    %490 = vmatprep.subr.mxu0 %v73
    %491 = vmatpush1.msra.mxu0 %v72
    %492 = vmatprep.subr.mxu0 %v76
    %493 = vmatpush1.msra.mxu0 %v75
    %494 = vmatprep.subr.mxu0 %v79
    %495 = vmatpush1.msra.mxu0 %v78
    %496 = vmatprep.subr.mxu0 %v82
    %497 = vmatpush1.msra.mxu0 %v81
    %498 = vmatprep.subr.mxu0 %v85
    %499 = vmatpush1.msra.mxu0 %v84
    %500 = vmatprep.subr.mxu0 %v88
    %501 = vmatpush1.msra.mxu0 %v87
    %502 = vmatprep.subr.mxu0 %v91
    %503 = vmatpush1.msra.mxu0 %v90
    %504 = vmatprep.subr.mxu0 %v94
    %505 = vmatpush1.msra.mxu0 %v93
    %506 = vmatprep.subr.mxu0 %v97
    %507 = vmatpush1.msra.mxu0 %v96
    %508 = vmatprep.subr.mxu0 0.0
    %509 = vmatpush1.msra.mxu0 0.0
    %510 = vmatprep.subr.mxu0 0.0
    %511 = vmatpush1.msra.mxu0 0.0
    %512 = vmatprep.subr.mxu0 0.0
    %513 = vmatpush1.msra.mxu0 0.0
    %514 = vmatprep.subr.mxu0 0.0
    %515 = vmatpush1.msra.mxu0 0.0
    %516 = vmatprep.subr.mxu0 0.0
    %517 = vmatpush1.msra.mxu0 0.0
    %518 = vmatprep.subr.mxu0 0.0
    %519 = vmatpush1.msra.mxu0 0.0
    %520 = vmatprep.subr.mxu0 0.0
    %521 = vmatpush1.msra.mxu0 0.0
    %522 = vmatprep.subr.mxu0 0.0
    %523 = vmatpush1.msra.mxu0 0.0
    %524 = vmatprep.subr.mxu0 0.0
    %525 = vmatpush1.msra.mxu0 0.0
    %526 = vmatprep.subr.mxu0 0.0
    %527 = vmatpush1.msra.mxu0 0.0
    %528 = vmatprep.subr.mxu0 0.0
    %529 = vmatpush1.msra.mxu0 0.0
    %530 = vmatprep.subr.mxu0 0.0
    %531 = vmatpush1.msra.mxu0 0.0
    %532 = vmatprep.subr.mxu0 0.0
    %533 = vmatpush1.msra.mxu0 0.0
    %534 = vmatprep.subr.mxu0 0.0
    %535 = vmatpush1.msra.mxu0 0.0
    %536 = vmatprep.subr.mxu0 0.0
    %537 = vmatpush1.msra.mxu0 0.0
    %538 = vmatprep.subr.mxu0 0.0
    %539 = vmatpush1.msra.mxu0 0.0
    %540 = vmatprep.mubr.f32.mxu0 0.0
    %541 = vmatmul.mubr.f32.gmra.mrb[0].mxu0 %v468
    %v542 = vpop.f32.mrb[0].mxu0
    %v543 = vadd.f32 %v104, %v542
    %v544 = vpop.f32.mrb[0].mxu0
    %v545 = vadd.f32 %v108, %v544
    %546 = vdwg.mxu0
    %547 = vmatprep.subr.mxu0 0.0
    %548 = vmatpush1.msra.mxu0 %v53
    %549 = vmatprep.subr.mxu0 0.0
    %550 = vmatpush1.msra.mxu0 %v56
    %551 = vmatprep.subr.mxu0 0.0
    %552 = vmatpush1.msra.mxu0 %v59
    %553 = vmatprep.subr.mxu0 0.0
    %554 = vmatpush1.msra.mxu0 %v62
    %555 = vmatprep.subr.mxu0 0.0
    %556 = vmatpush1.msra.mxu0 %v65
    %557 = vmatprep.subr.mxu0 0.0
    %558 = vmatpush1.msra.mxu0 %v68
    %559 = vmatprep.subr.mxu0 0.0
    %560 = vmatpush1.msra.mxu0 %v71
    %561 = vmatprep.subr.mxu0 0.0
    %562 = vmatpush1.msra.mxu0 %v74
    %563 = vmatprep.subr.mxu0 0.0
    %564 = vmatpush1.msra.mxu0 %v77
    %565 = vmatprep.subr.mxu0 0.0
    %566 = vmatpush1.msra.mxu0 %v80
    %567 = vmatprep.subr.mxu0 0.0
    %568 = vmatpush1.msra.mxu0 %v83
    %569 = vmatprep.subr.mxu0 0.0
    %570 = vmatpush1.msra.mxu0 %v86
    %571 = vmatprep.subr.mxu0 0.0
    %572 = vmatpush1.msra.mxu0 %v89
    %573 = vmatprep.subr.mxu0 0.0
    %574 = vmatpush1.msra.mxu0 %v92
    %575 = vmatprep.subr.mxu0 0.0
    %576 = vmatpush1.msra.mxu0 %v95
    %577 = vmatprep.subr.mxu0 0.0
    %578 = vmatpush1.msra.mxu0 %v98
    %579 = vmatprep.subr.mxu0 0.0
    %580 = vmatpush1.msra.mxu0 0.0
    %581 = vmatprep.subr.mxu0 0.0
    %582 = vmatpush1.msra.mxu0 0.0
    %583 = vmatprep.subr.mxu0 0.0
    %584 = vmatpush1.msra.mxu0 0.0
    %585 = vmatprep.subr.mxu0 0.0
    %586 = vmatpush1.msra.mxu0 0.0
    %587 = vmatprep.subr.mxu0 0.0
    %588 = vmatpush1.msra.mxu0 0.0
    %589 = vmatprep.subr.mxu0 0.0
    %590 = vmatpush1.msra.mxu0 0.0
    %591 = vmatprep.subr.mxu0 0.0
    %592 = vmatpush1.msra.mxu0 0.0
    %593 = vmatprep.subr.mxu0 0.0
    %594 = vmatpush1.msra.mxu0 0.0
    %595 = vmatprep.subr.mxu0 0.0
    %596 = vmatpush1.msra.mxu0 0.0
    %597 = vmatprep.subr.mxu0 0.0
    %598 = vmatpush1.msra.mxu0 0.0
    %599 = vmatprep.subr.mxu0 0.0
    %600 = vmatpush1.msra.mxu0 0.0
    %601 = vmatprep.subr.mxu0 0.0
    %602 = vmatpush1.msra.mxu0 0.0
    %603 = vmatprep.subr.mxu0 0.0
    %604 = vmatpush1.msra.mxu0 0.0
    %605 = vmatprep.subr.mxu0 0.0
    %606 = vmatpush1.msra.mxu0 0.0
    %607 = vmatprep.subr.mxu0 0.0
    %608 = vmatpush1.msra.mxu0 0.0
    %609 = vmatprep.subr.mxu0 0.0
    %610 = vmatpush1.msra.mxu0 0.0
    %611 = vmatprep.mubr.f32.mxu0 0.0
    %612 = vmatmul.mubr.f32.gmra.mrb[0].mxu0 %v468
    %v613 = vpop.f32.mrb[0].mxu0
    %v614 = vadd.f32 %v112, %v613
    %v615 = vpop.f32.mrb[0].mxu0
    %616 = vdwg.mxu0
    %v617 = vadd.f32 %v473, %v543
    %v618 = vxor.u32 %v617, 2147483648
    %v619 = vmul.f32 %v618, 1.442695
    %v620 = vpow.pop %v619
    %v621 = vadd.f32 %v620, 1.0
    %v622 = vrcp.pop %v621
    %v623 = vmul.f32 1.0, %v622
    %v624 = vadd.f32 %v474, %v545
    %v625 = vxor.u32 %v624, 2147483648
    %v626 = vmul.f32 %v625, 1.442695
    %v627 = vpow.pop %v626
    %v628 = vadd.f32 %v627, 1.0
    %v629 = vrcp.pop %v628
    %v630 = vmul.f32 1.0, %v629
    %v631 = vmul.f32 %v623, %v614
    %v632 = vadd.f32 %v475, %v631
    %v633 = vtanh.pop %v632
    %v634 = vsub.f32 1.0, %v630
    %v635 = vmul.f32 %v634, %v633
    %v636 = vmul.f32 %v630, %v468
    %v637 = vadd.f32 %v635, %v636
    %s638 = sadd.s32 %s117, 2
    %v639 = vstv %s638
    %vm640 = vcmp.lt.s32.totalorder %v639, %v116
    %v641 = vsel %vm640, 1, 0
    %642 = vset.pattern.permute.xlu0 0
    %643 = vperm.xlu0 %642, %v641
    %v644 = vpop.permute.xlu0 %643
    %vm645 = vcmp.eq.s32.totalorder %v644, 1
    %v646 = vsel %vm645, %v637, %v468
    %v647 = vsel %vm645, %v637, 0.0
    %s648 = scalar_lea.vmem [#allocation8], 16
    %649 = vst [vmem:[%s648] sm:$0xff] %v647
    %s650 = scalar_lea.vmem [#allocation3], 72
    %v651 = vld [vmem:[%s650] sm:$0xff]
    %v652 = vld [vmem:[%s650 + $0x8] sm:$0xff]
    %v653 = vld [vmem:[%s650 + $0x10] sm:$0xff]
    %654 = vmatprep.subr.mxu0 %v52
    %655 = vmatpush1.msra.mxu0 %v51
    %656 = vmatprep.subr.mxu0 %v55
    %657 = vmatpush1.msra.mxu0 %v54
    %658 = vmatprep.subr.mxu0 %v58
    %659 = vmatpush1.msra.mxu0 %v57
    %660 = vmatprep.subr.mxu0 %v61
    %661 = vmatpush1.msra.mxu0 %v60
    %662 = vmatprep.subr.mxu0 %v64
    %663 = vmatpush1.msra.mxu0 %v63
    %664 = vmatprep.subr.mxu0 %v67
    %665 = vmatpush1.msra.mxu0 %v66
    %666 = vmatprep.subr.mxu0 %v70
    %667 = vmatpush1.msra.mxu0 %v69
    %668 = vmatprep.subr.mxu0 %v73
    %669 = vmatpush1.msra.mxu0 %v72
    %670 = vmatprep.subr.mxu0 %v76
    %671 = vmatpush1.msra.mxu0 %v75
    %672 = vmatprep.subr.mxu0 %v79
    %673 = vmatpush1.msra.mxu0 %v78
    %674 = vmatprep.subr.mxu0 %v82
    %675 = vmatpush1.msra.mxu0 %v81
    %676 = vmatprep.subr.mxu0 %v85
    %677 = vmatpush1.msra.mxu0 %v84
    %678 = vmatprep.subr.mxu0 %v88
    %679 = vmatpush1.msra.mxu0 %v87
    %680 = vmatprep.subr.mxu0 %v91
    %681 = vmatpush1.msra.mxu0 %v90
    %682 = vmatprep.subr.mxu0 %v94
    %683 = vmatpush1.msra.mxu0 %v93
    %684 = vmatprep.subr.mxu0 %v97
    %685 = vmatpush1.msra.mxu0 %v96
    %686 = vmatprep.subr.mxu0 0.0
    %687 = vmatpush1.msra.mxu0 0.0
    %688 = vmatprep.subr.mxu0 0.0
    %689 = vmatpush1.msra.mxu0 0.0
    %690 = vmatprep.subr.mxu0 0.0
    %691 = vmatpush1.msra.mxu0 0.0
    %692 = vmatprep.subr.mxu0 0.0
    %693 = vmatpush1.msra.mxu0 0.0
    %694 = vmatprep.subr.mxu0 0.0
    %695 = vmatpush1.msra.mxu0 0.0
    %696 = vmatprep.subr.mxu0 0.0
    %697 = vmatpush1.msra.mxu0 0.0
    %698 = vmatprep.subr.mxu0 0.0
    %699 = vmatpush1.msra.mxu0 0.0
    %700 = vmatprep.subr.mxu0 0.0
    %701 = vmatpush1.msra.mxu0 0.0
    %702 = vmatprep.subr.mxu0 0.0
    %703 = vmatpush1.msra.mxu0 0.0
    %704 = vmatprep.subr.mxu0 0.0
    %705 = vmatpush1.msra.mxu0 0.0
    %706 = vmatprep.subr.mxu0 0.0
    %707 = vmatpush1.msra.mxu0 0.0
    %708 = vmatprep.subr.mxu0 0.0
    %709 = vmatpush1.msra.mxu0 0.0
    %710 = vmatprep.subr.mxu0 0.0
    %711 = vmatpush1.msra.mxu0 0.0
    %712 = vmatprep.subr.mxu0 0.0
    %713 = vmatpush1.msra.mxu0 0.0
    %714 = vmatprep.subr.mxu0 0.0
    %715 = vmatpush1.msra.mxu0 0.0
    %716 = vmatprep.subr.mxu0 0.0
    %717 = vmatpush1.msra.mxu0 0.0
    %718 = vmatprep.mubr.f32.mxu0 0.0
    %719 = vmatmul.mubr.f32.gmra.mrb[0].mxu0 %v646
    %v720 = vpop.f32.mrb[0].mxu0
    %v721 = vadd.f32 %v104, %v720
    %v722 = vpop.f32.mrb[0].mxu0
    %v723 = vadd.f32 %v108, %v722
    %724 = vdwg.mxu0
    %725 = vmatprep.subr.mxu0 0.0
    %726 = vmatpush1.msra.mxu0 %v53
    %727 = vmatprep.subr.mxu0 0.0
    %728 = vmatpush1.msra.mxu0 %v56
    %729 = vmatprep.subr.mxu0 0.0
    %730 = vmatpush1.msra.mxu0 %v59
    %731 = vmatprep.subr.mxu0 0.0
    %732 = vmatpush1.msra.mxu0 %v62
    %733 = vmatprep.subr.mxu0 0.0
    %734 = vmatpush1.msra.mxu0 %v65
    %735 = vmatprep.subr.mxu0 0.0
    %736 = vmatpush1.msra.mxu0 %v68
    %737 = vmatprep.subr.mxu0 0.0
    %738 = vmatpush1.msra.mxu0 %v71
    %739 = vmatprep.subr.mxu0 0.0
    %740 = vmatpush1.msra.mxu0 %v74
    %741 = vmatprep.subr.mxu0 0.0
    %742 = vmatpush1.msra.mxu0 %v77
    %743 = vmatprep.subr.mxu0 0.0
    %744 = vmatpush1.msra.mxu0 %v80
    %745 = vmatprep.subr.mxu0 0.0
    %746 = vmatpush1.msra.mxu0 %v83
    %747 = vmatprep.subr.mxu0 0.0
    %748 = vmatpush1.msra.mxu0 %v86
    %749 = vmatprep.subr.mxu0 0.0
    %750 = vmatpush1.msra.mxu0 %v89
    %751 = vmatprep.subr.mxu0 0.0
    %752 = vmatpush1.msra.mxu0 %v92
    %753 = vmatprep.subr.mxu0 0.0
    %754 = vmatpush1.msra.mxu0 %v95
    %755 = vmatprep.subr.mxu0 0.0
    %756 = vmatpush1.msra.mxu0 %v98
    %757 = vmatprep.subr.mxu0 0.0
    %758 = vmatpush1.msra.mxu0 0.0
    %759 = vmatprep.subr.mxu0 0.0
    %760 = vmatpush1.msra.mxu0 0.0
    %761 = vmatprep.subr.mxu0 0.0
    %762 = vmatpush1.msra.mxu0 0.0
    %763 = vmatprep.subr.mxu0 0.0
    %764 = vmatpush1.msra.mxu0 0.0
    %765 = vmatprep.subr.mxu0 0.0
    %766 = vmatpush1.msra.mxu0 0.0
    %767 = vmatprep.subr.mxu0 0.0
    %768 = vmatpush1.msra.mxu0 0.0
    %769 = vmatprep.subr.mxu0 0.0
    %770 = vmatpush1.msra.mxu0 0.0
    %771 = vmatprep.subr.mxu0 0.0
    %772 = vmatpush1.msra.mxu0 0.0
    %773 = vmatprep.subr.mxu0 0.0
    %774 = vmatpush1.msra.mxu0 0.0
    %775 = vmatprep.subr.mxu0 0.0
    %776 = vmatpush1.msra.mxu0 0.0
    %777 = vmatprep.subr.mxu0 0.0
    %778 = vmatpush1.msra.mxu0 0.0
    %779 = vmatprep.subr.mxu0 0.0
    %780 = vmatpush1.msra.mxu0 0.0
    %781 = vmatprep.subr.mxu0 0.0
    %782 = vmatpush1.msra.mxu0 0.0
    %783 = vmatprep.subr.mxu0 0.0
    %784 = vmatpush1.msra.mxu0 0.0
    %785 = vmatprep.subr.mxu0 0.0
    %786 = vmatpush1.msra.mxu0 0.0
    %787 = vmatprep.subr.mxu0 0.0
    %788 = vmatpush1.msra.mxu0 0.0
    %789 = vmatprep.mubr.f32.mxu0 0.0
    %790 = vmatmul.mubr.f32.gmra.mrb[0].mxu0 %v646
    %v791 = vpop.f32.mrb[0].mxu0
    %v792 = vadd.f32 %v112, %v791
    %v793 = vpop.f32.mrb[0].mxu0
    %794 = vdwg.mxu0
    %v795 = vadd.f32 %v651, %v721
    %v796 = vxor.u32 %v795, 2147483648
    %v797 = vmul.f32 %v796, 1.442695
    %v798 = vpow.pop %v797
    %v799 = vadd.f32 %v798, 1.0
    %v800 = vrcp.pop %v799
    %v801 = vmul.f32 1.0, %v800
    %v802 = vadd.f32 %v652, %v723
    %v803 = vxor.u32 %v802, 2147483648
    %v804 = vmul.f32 %v803, 1.442695
    %v805 = vpow.pop %v804
    %v806 = vadd.f32 %v805, 1.0
    %v807 = vrcp.pop %v806
    %v808 = vmul.f32 1.0, %v807
    %v809 = vmul.f32 %v801, %v792
    %v810 = vadd.f32 %v653, %v809
    %v811 = vtanh.pop %v810
    %v812 = vsub.f32 1.0, %v808
    %v813 = vmul.f32 %v812, %v811
    %v814 = vmul.f32 %v808, %v646
    %v815 = vadd.f32 %v813, %v814
    %s816 = sadd.s32 %s117, 3
    %v817 = vstv %s816
    %vm818 = vcmp.lt.s32.totalorder %v817, %v116
    %v819 = vsel %vm818, 1, 0
    %820 = vset.pattern.permute.xlu0 0
    %821 = vperm.xlu0 %820, %v819
    %v822 = vpop.permute.xlu0 %821
    %vm823 = vcmp.eq.s32.totalorder %v822, 1
    %v824 = vsel %vm823, %v815, %v646
    %v825 = vsel %vm823, %v815, 0.0
    %s826 = scalar_lea.vmem [#allocation8], 24
    %827 = vst [vmem:[%s826] sm:$0xff] %v825
    %s828 = scalar_lea.vmem [#allocation3], 96
    %v829 = vld [vmem:[%s828] sm:$0xff]
    %v830 = vld [vmem:[%s828 + $0x8] sm:$0xff]
    %v831 = vld [vmem:[%s828 + $0x10] sm:$0xff]
    %832 = vmatprep.subr.mxu0 %v52
    %833 = vmatpush1.msra.mxu0 %v51
    %834 = vmatprep.subr.mxu0 %v55
    %835 = vmatpush1.msra.mxu0 %v54
    %836 = vmatprep.subr.mxu0 %v58
    %837 = vmatpush1.msra.mxu0 %v57
    %838 = vmatprep.subr.mxu0 %v61
    %839 = vmatpush1.msra.mxu0 %v60
    %840 = vmatprep.subr.mxu0 %v64
    %841 = vmatpush1.msra.mxu0 %v63
    %842 = vmatprep.subr.mxu0 %v67
    %843 = vmatpush1.msra.mxu0 %v66
    %844 = vmatprep.subr.mxu0 %v70
    %845 = vmatpush1.msra.mxu0 %v69
    %846 = vmatprep.subr.mxu0 %v73
    %847 = vmatpush1.msra.mxu0 %v72
    %848 = vmatprep.subr.mxu0 %v76
    %849 = vmatpush1.msra.mxu0 %v75
    %850 = vmatprep.subr.mxu0 %v79
    %851 = vmatpush1.msra.mxu0 %v78
    %852 = vmatprep.subr.mxu0 %v82
    %853 = vmatpush1.msra.mxu0 %v81
    %854 = vmatprep.subr.mxu0 %v85
    %855 = vmatpush1.msra.mxu0 %v84
    %856 = vmatprep.subr.mxu0 %v88
    %857 = vmatpush1.msra.mxu0 %v87
    %858 = vmatprep.subr.mxu0 %v91
    %859 = vmatpush1.msra.mxu0 %v90
    %860 = vmatprep.subr.mxu0 %v94
    %861 = vmatpush1.msra.mxu0 %v93
    %862 = vmatprep.subr.mxu0 %v97
    %863 = vmatpush1.msra.mxu0 %v96
    %864 = vmatprep.subr.mxu0 0.0
    %865 = vmatpush1.msra.mxu0 0.0
    %866 = vmatprep.subr.mxu0 0.0
    %867 = vmatpush1.msra.mxu0 0.0
    %868 = vmatprep.subr.mxu0 0.0
    %869 = vmatpush1.msra.mxu0 0.0
    %870 = vmatprep.subr.mxu0 0.0
    %871 = vmatpush1.msra.mxu0 0.0
    %872 = vmatprep.subr.mxu0 0.0
    %873 = vmatpush1.msra.mxu0 0.0
    %874 = vmatprep.subr.mxu0 0.0
    %875 = vmatpush1.msra.mxu0 0.0
    %876 = vmatprep.subr.mxu0 0.0
    %877 = vmatpush1.msra.mxu0 0.0
    %878 = vmatprep.subr.mxu0 0.0
    %879 = vmatpush1.msra.mxu0 0.0
    %880 = vmatprep.subr.mxu0 0.0
    %881 = vmatpush1.msra.mxu0 0.0
    %882 = vmatprep.subr.mxu0 0.0
    %883 = vmatpush1.msra.mxu0 0.0
    %884 = vmatprep.subr.mxu0 0.0
    %885 = vmatpush1.msra.mxu0 0.0
    %886 = vmatprep.subr.mxu0 0.0
    %887 = vmatpush1.msra.mxu0 0.0
    %888 = vmatprep.subr.mxu0 0.0
    %889 = vmatpush1.msra.mxu0 0.0
    %890 = vmatprep.subr.mxu0 0.0
    %891 = vmatpush1.msra.mxu0 0.0
    %892 = vmatprep.subr.mxu0 0.0
    %893 = vmatpush1.msra.mxu0 0.0
    %894 = vmatprep.subr.mxu0 0.0
    %895 = vmatpush1.msra.mxu0 0.0
    %896 = vmatprep.mubr.f32.mxu0 0.0
    %897 = vmatmul.mubr.f32.gmra.mrb[0].mxu0 %v824
    %v898 = vpop.f32.mrb[0].mxu0
    %v899 = vadd.f32 %v104, %v898
    %v900 = vpop.f32.mrb[0].mxu0
    %v901 = vadd.f32 %v108, %v900
    %902 = vdwg.mxu0
    %903 = vmatprep.subr.mxu0 0.0
    %904 = vmatpush1.msra.mxu0 %v53
    %905 = vmatprep.subr.mxu0 0.0
    %906 = vmatpush1.msra.mxu0 %v56
    %907 = vmatprep.subr.mxu0 0.0
    %908 = vmatpush1.msra.mxu0 %v59
    %909 = vmatprep.subr.mxu0 0.0
    %910 = vmatpush1.msra.mxu0 %v62
    %911 = vmatprep.subr.mxu0 0.0
    %912 = vmatpush1.msra.mxu0 %v65
    %913 = vmatprep.subr.mxu0 0.0
    %914 = vmatpush1.msra.mxu0 %v68
    %915 = vmatprep.subr.mxu0 0.0
    %916 = vmatpush1.msra.mxu0 %v71
    %917 = vmatprep.subr.mxu0 0.0
    %918 = vmatpush1.msra.mxu0 %v74
    %919 = vmatprep.subr.mxu0 0.0
    %920 = vmatpush1.msra.mxu0 %v77
    %921 = vmatprep.subr.mxu0 0.0
    %922 = vmatpush1.msra.mxu0 %v80
    %923 = vmatprep.subr.mxu0 0.0
    %924 = vmatpush1.msra.mxu0 %v83
    %925 = vmatprep.subr.mxu0 0.0
    %926 = vmatpush1.msra.mxu0 %v86
    %927 = vmatprep.subr.mxu0 0.0
    %928 = vmatpush1.msra.mxu0 %v89
    %929 = vmatprep.subr.mxu0 0.0
    %930 = vmatpush1.msra.mxu0 %v92
    %931 = vmatprep.subr.mxu0 0.0
    %932 = vmatpush1.msra.mxu0 %v95
    %933 = vmatprep.subr.mxu0 0.0
    %934 = vmatpush1.msra.mxu0 %v98
    %935 = vmatprep.subr.mxu0 0.0
    %936 = vmatpush1.msra.mxu0 0.0
    %937 = vmatprep.subr.mxu0 0.0
    %938 = vmatpush1.msra.mxu0 0.0
    %939 = vmatprep.subr.mxu0 0.0
    %940 = vmatpush1.msra.mxu0 0.0
    %941 = vmatprep.subr.mxu0 0.0
    %942 = vmatpush1.msra.mxu0 0.0
    %943 = vmatprep.subr.mxu0 0.0
    %944 = vmatpush1.msra.mxu0 0.0
    %945 = vmatprep.subr.mxu0 0.0
    %946 = vmatpush1.msra.mxu0 0.0
    %947 = vmatprep.subr.mxu0 0.0
    %948 = vmatpush1.msra.mxu0 0.0
    %949 = vmatprep.subr.mxu0 0.0
    %950 = vmatpush1.msra.mxu0 0.0
    %951 = vmatprep.subr.mxu0 0.0
    %952 = vmatpush1.msra.mxu0 0.0
    %953 = vmatprep.subr.mxu0 0.0
    %954 = vmatpush1.msra.mxu0 0.0
    %955 = vmatprep.subr.mxu0 0.0
    %956 = vmatpush1.msra.mxu0 0.0
    %957 = vmatprep.subr.mxu0 0.0
    %958 = vmatpush1.msra.mxu0 0.0
    %959 = vmatprep.subr.mxu0 0.0
    %960 = vmatpush1.msra.mxu0 0.0
    %961 = vmatprep.subr.mxu0 0.0
    %962 = vmatpush1.msra.mxu0 0.0
    %963 = vmatprep.subr.mxu0 0.0
    %964 = vmatpush1.msra.mxu0 0.0
    %965 = vmatprep.subr.mxu0 0.0
    %966 = vmatpush1.msra.mxu0 0.0
    %967 = vmatprep.mubr.f32.mxu0 0.0
    %968 = vmatmul.mubr.f32.gmra.mrb[0].mxu0 %v824
    %v969 = vpop.f32.mrb[0].mxu0
    %v970 = vadd.f32 %v112, %v969
    %v971 = vpop.f32.mrb[0].mxu0
    %972 = vdwg.mxu0
    %v973 = vadd.f32 %v829, %v899
    %v974 = vxor.u32 %v973, 2147483648
    %v975 = vmul.f32 %v974, 1.442695
    %v976 = vpow.pop %v975
    %v977 = vadd.f32 %v976, 1.0
    %v978 = vrcp.pop %v977
    %v979 = vmul.f32 1.0, %v978
    %v980 = vadd.f32 %v830, %v901
    %v981 = vxor.u32 %v980, 2147483648
    %v982 = vmul.f32 %v981, 1.442695
    %v983 = vpow.pop %v982
    %v984 = vadd.f32 %v983, 1.0
    %v985 = vrcp.pop %v984
    %v986 = vmul.f32 1.0, %v985
    %v987 = vmul.f32 %v979, %v970
    %v988 = vadd.f32 %v831, %v987
    %v989 = vtanh.pop %v988
    %v990 = vsub.f32 1.0, %v986
    %v991 = vmul.f32 %v990, %v989
    %v992 = vmul.f32 %v986, %v824
    %v993 = vadd.f32 %v991, %v992
    %s994 = sadd.s32 %s117, 4
    %v995 = vstv %s994
    %vm996 = vcmp.lt.s32.totalorder %v995, %v116
    %v997 = vsel %vm996, 1, 0
    %998 = vset.pattern.permute.xlu0 0
    %999 = vperm.xlu0 %998, %v997
    %v1000 = vpop.permute.xlu0 %999
    %vm1001 = vcmp.eq.s32.totalorder %v1000, 1
    %v1002 = vsel %vm1001, %v993, %v824
    %v1003 = vsel %vm1001, %v993, 0.0
    %s1004 = scalar_lea.vmem [#allocation8], 32
    %1005 = vst [vmem:[%s1004] sm:$0xff] %v1003
    %s1006 = scalar_lea.vmem [#allocation3], 120
    %v1007 = vld [vmem:[%s1006] sm:$0xff]
    %v1008 = vld [vmem:[%s1006 + $0x8] sm:$0xff]
    %v1009 = vld [vmem:[%s1006 + $0x10] sm:$0xff]
    %1010 = vmatprep.subr.mxu0 %v52
    %1011 = vmatpush1.msra.mxu0 %v51
    %1012 = vmatprep.subr.mxu0 %v55
    %1013 = vmatpush1.msra.mxu0 %v54
    %1014 = vmatprep.subr.mxu0 %v58
    %1015 = vmatpush1.msra.mxu0 %v57
    %1016 = vmatprep.subr.mxu0 %v61
    %1017 = vmatpush1.msra.mxu0 %v60
    %1018 = vmatprep.subr.mxu0 %v64
    %1019 = vmatpush1.msra.mxu0 %v63
    %1020 = vmatprep.subr.mxu0 %v67
    %1021 = vmatpush1.msra.mxu0 %v66
    %1022 = vmatprep.subr.mxu0 %v70
    %1023 = vmatpush1.msra.mxu0 %v69
    %1024 = vmatprep.subr.mxu0 %v73
    %1025 = vmatpush1.msra.mxu0 %v72
    %1026 = vmatprep.subr.mxu0 %v76
    %1027 = vmatpush1.msra.mxu0 %v75
    %1028 = vmatprep.subr.mxu0 %v79
    %1029 = vmatpush1.msra.mxu0 %v78
    %1030 = vmatprep.subr.mxu0 %v82
    %1031 = vmatpush1.msra.mxu0 %v81
    %1032 = vmatprep.subr.mxu0 %v85
    %1033 = vmatpush1.msra.mxu0 %v84
    %1034 = vmatprep.subr.mxu0 %v88
    %1035 = vmatpush1.msra.mxu0 %v87
    %1036 = vmatprep.subr.mxu0 %v91
    %1037 = vmatpush1.msra.mxu0 %v90
    %1038 = vmatprep.subr.mxu0 %v94
    %1039 = vmatpush1.msra.mxu0 %v93
    %1040 = vmatprep.subr.mxu0 %v97
    %1041 = vmatpush1.msra.mxu0 %v96
    %1042 = vmatprep.subr.mxu0 0.0
    %1043 = vmatpush1.msra.mxu0 0.0
    %1044 = vmatprep.subr.mxu0 0.0
    %1045 = vmatpush1.msra.mxu0 0.0
    %1046 = vmatprep.subr.mxu0 0.0
    %1047 = vmatpush1.msra.mxu0 0.0
    %1048 = vmatprep.subr.mxu0 0.0
    %1049 = vmatpush1.msra.mxu0 0.0
    %1050 = vmatprep.subr.mxu0 0.0
    %1051 = vmatpush1.msra.mxu0 0.0
    %1052 = vmatprep.subr.mxu0 0.0
    %1053 = vmatpush1.msra.mxu0 0.0
    %1054 = vmatprep.subr.mxu0 0.0
    %1055 = vmatpush1.msra.mxu0 0.0
    %1056 = vmatprep.subr.mxu0 0.0
    %1057 = vmatpush1.msra.mxu0 0.0
    %1058 = vmatprep.subr.mxu0 0.0
    %1059 = vmatpush1.msra.mxu0 0.0
    %1060 = vmatprep.subr.mxu0 0.0
    %1061 = vmatpush1.msra.mxu0 0.0
    %1062 = vmatprep.subr.mxu0 0.0
    %1063 = vmatpush1.msra.mxu0 0.0
    %1064 = vmatprep.subr.mxu0 0.0
    %1065 = vmatpush1.msra.mxu0 0.0
    %1066 = vmatprep.subr.mxu0 0.0
    %1067 = vmatpush1.msra.mxu0 0.0
    %1068 = vmatprep.subr.mxu0 0.0
    %1069 = vmatpush1.msra.mxu0 0.0
    %1070 = vmatprep.subr.mxu0 0.0
    %1071 = vmatpush1.msra.mxu0 0.0
    %1072 = vmatprep.subr.mxu0 0.0
    %1073 = vmatpush1.msra.mxu0 0.0
    %1074 = vmatprep.mubr.f32.mxu0 0.0
    %1075 = vmatmul.mubr.f32.gmra.mrb[0].mxu0 %v1002
    %v1076 = vpop.f32.mrb[0].mxu0
    %v1077 = vadd.f32 %v104, %v1076
    %v1078 = vpop.f32.mrb[0].mxu0
    %v1079 = vadd.f32 %v108, %v1078
    %1080 = vdwg.mxu0
    %1081 = vmatprep.subr.mxu0 0.0
    %1082 = vmatpush1.msra.mxu0 %v53
    %1083 = vmatprep.subr.mxu0 0.0
    %1084 = vmatpush1.msra.mxu0 %v56
    %1085 = vmatprep.subr.mxu0 0.0
    %1086 = vmatpush1.msra.mxu0 %v59
    %1087 = vmatprep.subr.mxu0 0.0
    %1088 = vmatpush1.msra.mxu0 %v62
    %1089 = vmatprep.subr.mxu0 0.0
    %1090 = vmatpush1.msra.mxu0 %v65
    %1091 = vmatprep.subr.mxu0 0.0
    %1092 = vmatpush1.msra.mxu0 %v68
    %1093 = vmatprep.subr.mxu0 0.0
    %1094 = vmatpush1.msra.mxu0 %v71
    %1095 = vmatprep.subr.mxu0 0.0
    %1096 = vmatpush1.msra.mxu0 %v74
    %1097 = vmatprep.subr.mxu0 0.0
    %1098 = vmatpush1.msra.mxu0 %v77
    %1099 = vmatprep.subr.mxu0 0.0
    %1100 = vmatpush1.msra.mxu0 %v80
    %1101 = vmatprep.subr.mxu0 0.0
    %1102 = vmatpush1.msra.mxu0 %v83
    %1103 = vmatprep.subr.mxu0 0.0
    %1104 = vmatpush1.msra.mxu0 %v86
    %1105 = vmatprep.subr.mxu0 0.0
    %1106 = vmatpush1.msra.mxu0 %v89
    %1107 = vmatprep.subr.mxu0 0.0
    %1108 = vmatpush1.msra.mxu0 %v92
    %1109 = vmatprep.subr.mxu0 0.0
    %1110 = vmatpush1.msra.mxu0 %v95
    %1111 = vmatprep.subr.mxu0 0.0
    %1112 = vmatpush1.msra.mxu0 %v98
    %1113 = vmatprep.subr.mxu0 0.0
    %1114 = vmatpush1.msra.mxu0 0.0
    %1115 = vmatprep.subr.mxu0 0.0
    %1116 = vmatpush1.msra.mxu0 0.0
    %1117 = vmatprep.subr.mxu0 0.0
    %1118 = vmatpush1.msra.mxu0 0.0
    %1119 = vmatprep.subr.mxu0 0.0
    %1120 = vmatpush1.msra.mxu0 0.0
    %1121 = vmatprep.subr.mxu0 0.0
    %1122 = vmatpush1.msra.mxu0 0.0
    %1123 = vmatprep.subr.mxu0 0.0
    %1124 = vmatpush1.msra.mxu0 0.0
    %1125 = vmatprep.subr.mxu0 0.0
    %1126 = vmatpush1.msra.mxu0 0.0
    %1127 = vmatprep.subr.mxu0 0.0
    %1128 = vmatpush1.msra.mxu0 0.0
    %1129 = vmatprep.subr.mxu0 0.0
    %1130 = vmatpush1.msra.mxu0 0.0
    %1131 = vmatprep.subr.mxu0 0.0
    %1132 = vmatpush1.msra.mxu0 0.0
    %1133 = vmatprep.subr.mxu0 0.0
    %1134 = vmatpush1.msra.mxu0 0.0
    %1135 = vmatprep.subr.mxu0 0.0
    %1136 = vmatpush1.msra.mxu0 0.0
    %1137 = vmatprep.subr.mxu0 0.0
    %1138 = vmatpush1.msra.mxu0 0.0
    %1139 = vmatprep.subr.mxu0 0.0
    %1140 = vmatpush1.msra.mxu0 0.0
    %1141 = vmatprep.subr.mxu0 0.0
    %1142 = vmatpush1.msra.mxu0 0.0
    %1143 = vmatprep.subr.mxu0 0.0
    %1144 = vmatpush1.msra.mxu0 0.0
    %1145 = vmatprep.mubr.f32.mxu0 0.0
    %1146 = vmatmul.mubr.f32.gmra.mrb[0].mxu0 %v1002
    %v1147 = vpop.f32.mrb[0].mxu0
    %v1148 = vadd.f32 %v112, %v1147
    %v1149 = vpop.f32.mrb[0].mxu0
    %1150 = vdwg.mxu0
    %v1151 = vadd.f32 %v1007, %v1077
    %v1152 = vxor.u32 %v1151, 2147483648
    %v1153 = vmul.f32 %v1152, 1.442695
    %v1154 = vpow.pop %v1153
    %v1155 = vadd.f32 %v1154, 1.0
    %v1156 = vrcp.pop %v1155
    %v1157 = vmul.f32 1.0, %v1156
    %v1158 = vadd.f32 %v1008, %v1079
    %v1159 = vxor.u32 %v1158, 2147483648
    %v1160 = vmul.f32 %v1159, 1.442695
    %v1161 = vpow.pop %v1160
    %v1162 = vadd.f32 %v1161, 1.0
    %v1163 = vrcp.pop %v1162
    %v1164 = vmul.f32 1.0, %v1163
    %v1165 = vmul.f32 %v1157, %v1148
    %v1166 = vadd.f32 %v1009, %v1165
    %v1167 = vtanh.pop %v1166
    %v1168 = vsub.f32 1.0, %v1164
    %v1169 = vmul.f32 %v1168, %v1167
    %v1170 = vmul.f32 %v1164, %v1002
    %v1171 = vadd.f32 %v1169, %v1170
    %s1172 = sadd.s32 %s117, 5
    %v1173 = vstv %s1172
    %vm1174 = vcmp.lt.s32.totalorder %v1173, %v116
    %v1175 = vsel %vm1174, 1, 0
    %1176 = vset.pattern.permute.xlu0 0
    %1177 = vperm.xlu0 %1176, %v1175
    %v1178 = vpop.permute.xlu0 %1177
    %vm1179 = vcmp.eq.s32.totalorder %v1178, 1
    %v1180 = vsel %vm1179, %v1171, %v1002
    %v1181 = vsel %vm1179, %v1171, 0.0
    %s1182 = scalar_lea.vmem [#allocation8], 40
    %1183 = vst [vmem:[%s1182] sm:$0xff] %v1181
    %s1184 = scalar_lea.vmem [#allocation3], 144
    %v1185 = vld [vmem:[%s1184] sm:$0xff]
    %v1186 = vld [vmem:[%s1184 + $0x8] sm:$0xff]
    %v1187 = vld [vmem:[%s1184 + $0x10] sm:$0xff]
    %1188 = vmatprep.subr.mxu0 %v52
    %1189 = vmatpush1.msra.mxu0 %v51
    %1190 = vmatprep.subr.mxu0 %v55
    %1191 = vmatpush1.msra.mxu0 %v54
    %1192 = vmatprep.subr.mxu0 %v58
    %1193 = vmatpush1.msra.mxu0 %v57
    %1194 = vmatprep.subr.mxu0 %v61
    %1195 = vmatpush1.msra.mxu0 %v60
    %1196 = vmatprep.subr.mxu0 %v64
    %1197 = vmatpush1.msra.mxu0 %v63
    %1198 = vmatprep.subr.mxu0 %v67
    %1199 = vmatpush1.msra.mxu0 %v66
    %1200 = vmatprep.subr.mxu0 %v70
    %1201 = vmatpush1.msra.mxu0 %v69
    %1202 = vmatprep.subr.mxu0 %v73
    %1203 = vmatpush1.msra.mxu0 %v72
    %1204 = vmatprep.subr.mxu0 %v76
    %1205 = vmatpush1.msra.mxu0 %v75
    %1206 = vmatprep.subr.mxu0 %v79
    %1207 = vmatpush1.msra.mxu0 %v78
    %1208 = vmatprep.subr.mxu0 %v82
    %1209 = vmatpush1.msra.mxu0 %v81
    %1210 = vmatprep.subr.mxu0 %v85
    %1211 = vmatpush1.msra.mxu0 %v84
    %1212 = vmatprep.subr.mxu0 %v88
    %1213 = vmatpush1.msra.mxu0 %v87
    %1214 = vmatprep.subr.mxu0 %v91
    %1215 = vmatpush1.msra.mxu0 %v90
    %1216 = vmatprep.subr.mxu0 %v94
    %1217 = vmatpush1.msra.mxu0 %v93
    %1218 = vmatprep.subr.mxu0 %v97
    %1219 = vmatpush1.msra.mxu0 %v96
    %1220 = vmatprep.subr.mxu0 0.0
    %1221 = vmatpush1.msra.mxu0 0.0
    %1222 = vmatprep.subr.mxu0 0.0
    %1223 = vmatpush1.msra.mxu0 0.0
    %1224 = vmatprep.subr.mxu0 0.0
    %1225 = vmatpush1.msra.mxu0 0.0
    %1226 = vmatprep.subr.mxu0 0.0
    %1227 = vmatpush1.msra.mxu0 0.0
    %1228 = vmatprep.subr.mxu0 0.0
    %1229 = vmatpush1.msra.mxu0 0.0
    %1230 = vmatprep.subr.mxu0 0.0
    %1231 = vmatpush1.msra.mxu0 0.0
    %1232 = vmatprep.subr.mxu0 0.0
    %1233 = vmatpush1.msra.mxu0 0.0
    %1234 = vmatprep.subr.mxu0 0.0
    %1235 = vmatpush1.msra.mxu0 0.0
    %1236 = vmatprep.subr.mxu0 0.0
    %1237 = vmatpush1.msra.mxu0 0.0
    %1238 = vmatprep.subr.mxu0 0.0
    %1239 = vmatpush1.msra.mxu0 0.0
    %1240 = vmatprep.subr.mxu0 0.0
    %1241 = vmatpush1.msra.mxu0 0.0
    %1242 = vmatprep.subr.mxu0 0.0
    %1243 = vmatpush1.msra.mxu0 0.0
    %1244 = vmatprep.subr.mxu0 0.0
    %1245 = vmatpush1.msra.mxu0 0.0
    %1246 = vmatprep.subr.mxu0 0.0
    %1247 = vmatpush1.msra.mxu0 0.0
    %1248 = vmatprep.subr.mxu0 0.0
    %1249 = vmatpush1.msra.mxu0 0.0
    %1250 = vmatprep.subr.mxu0 0.0
    %1251 = vmatpush1.msra.mxu0 0.0
    %1252 = vmatprep.mubr.f32.mxu0 0.0
    %1253 = vmatmul.mubr.f32.gmra.mrb[0].mxu0 %v1180
    %v1254 = vpop.f32.mrb[0].mxu0
    %v1255 = vadd.f32 %v104, %v1254
    %v1256 = vpop.f32.mrb[0].mxu0
    %v1257 = vadd.f32 %v108, %v1256
    %1258 = vdwg.mxu0
    %1259 = vmatprep.subr.mxu0 0.0
    %1260 = vmatpush1.msra.mxu0 %v53
    %1261 = vmatprep.subr.mxu0 0.0
    %1262 = vmatpush1.msra.mxu0 %v56
    %1263 = vmatprep.subr.mxu0 0.0
    %1264 = vmatpush1.msra.mxu0 %v59
    %1265 = vmatprep.subr.mxu0 0.0
    %1266 = vmatpush1.msra.mxu0 %v62
    %1267 = vmatprep.subr.mxu0 0.0
    %1268 = vmatpush1.msra.mxu0 %v65
    %1269 = vmatprep.subr.mxu0 0.0
    %1270 = vmatpush1.msra.mxu0 %v68
    %1271 = vmatprep.subr.mxu0 0.0
    %1272 = vmatpush1.msra.mxu0 %v71
    %1273 = vmatprep.subr.mxu0 0.0
    %1274 = vmatpush1.msra.mxu0 %v74
    %1275 = vmatprep.subr.mxu0 0.0
    %1276 = vmatpush1.msra.mxu0 %v77
    %1277 = vmatprep.subr.mxu0 0.0
    %1278 = vmatpush1.msra.mxu0 %v80
    %1279 = vmatprep.subr.mxu0 0.0
    %1280 = vmatpush1.msra.mxu0 %v83
    %1281 = vmatprep.subr.mxu0 0.0
    %1282 = vmatpush1.msra.mxu0 %v86
    %1283 = vmatprep.subr.mxu0 0.0
    %1284 = vmatpush1.msra.mxu0 %v89
    %1285 = vmatprep.subr.mxu0 0.0
    %1286 = vmatpush1.msra.mxu0 %v92
    %1287 = vmatprep.subr.mxu0 0.0
    %1288 = vmatpush1.msra.mxu0 %v95
    %1289 = vmatprep.subr.mxu0 0.0
    %1290 = vmatpush1.msra.mxu0 %v98
    %1291 = vmatprep.subr.mxu0 0.0
    %1292 = vmatpush1.msra.mxu0 0.0
    %1293 = vmatprep.subr.mxu0 0.0
    %1294 = vmatpush1.msra.mxu0 0.0
    %1295 = vmatprep.subr.mxu0 0.0
    %1296 = vmatpush1.msra.mxu0 0.0
    %1297 = vmatprep.subr.mxu0 0.0
    %1298 = vmatpush1.msra.mxu0 0.0
    %1299 = vmatprep.subr.mxu0 0.0
    %1300 = vmatpush1.msra.mxu0 0.0
    %1301 = vmatprep.subr.mxu0 0.0
    %1302 = vmatpush1.msra.mxu0 0.0
    %1303 = vmatprep.subr.mxu0 0.0
    %1304 = vmatpush1.msra.mxu0 0.0
    %1305 = vmatprep.subr.mxu0 0.0
    %1306 = vmatpush1.msra.mxu0 0.0
    %1307 = vmatprep.subr.mxu0 0.0
    %1308 = vmatpush1.msra.mxu0 0.0
    %1309 = vmatprep.subr.mxu0 0.0
    %1310 = vmatpush1.msra.mxu0 0.0
    %1311 = vmatprep.subr.mxu0 0.0
    %1312 = vmatpush1.msra.mxu0 0.0
    %1313 = vmatprep.subr.mxu0 0.0
    %1314 = vmatpush1.msra.mxu0 0.0
    %1315 = vmatprep.subr.mxu0 0.0
    %1316 = vmatpush1.msra.mxu0 0.0
    %1317 = vmatprep.subr.mxu0 0.0
    %1318 = vmatpush1.msra.mxu0 0.0
    %1319 = vmatprep.subr.mxu0 0.0
    %1320 = vmatpush1.msra.mxu0 0.0
    %1321 = vmatprep.subr.mxu0 0.0
    %1322 = vmatpush1.msra.mxu0 0.0
    %1323 = vmatprep.mubr.f32.mxu0 0.0
    %1324 = vmatmul.mubr.f32.gmra.mrb[0].mxu0 %v1180
    %v1325 = vpop.f32.mrb[0].mxu0
    %v1326 = vadd.f32 %v112, %v1325
    %v1327 = vpop.f32.mrb[0].mxu0
    %1328 = vdwg.mxu0
    %v1329 = vadd.f32 %v1185, %v1255
    %v1330 = vxor.u32 %v1329, 2147483648
    %v1331 = vmul.f32 %v1330, 1.442695
    %v1332 = vpow.pop %v1331
    %v1333 = vadd.f32 %v1332, 1.0
    %v1334 = vrcp.pop %v1333
    %v1335 = vmul.f32 1.0, %v1334
    %v1336 = vadd.f32 %v1186, %v1257
    %v1337 = vxor.u32 %v1336, 2147483648
    %v1338 = vmul.f32 %v1337, 1.442695
    %v1339 = vpow.pop %v1338
    %v1340 = vadd.f32 %v1339, 1.0
    %v1341 = vrcp.pop %v1340
    %v1342 = vmul.f32 1.0, %v1341
    %v1343 = vmul.f32 %v1335, %v1326
    %v1344 = vadd.f32 %v1187, %v1343
    %v1345 = vtanh.pop %v1344
    %v1346 = vsub.f32 1.0, %v1342
    %v1347 = vmul.f32 %v1346, %v1345
    %v1348 = vmul.f32 %v1342, %v1180
    %v1349 = vadd.f32 %v1347, %v1348
    %s1350 = sadd.s32 %s117, 6
    %v1351 = vstv %s1350
    %vm1352 = vcmp.lt.s32.totalorder %v1351, %v116
    %v1353 = vsel %vm1352, 1, 0
    %1354 = vset.pattern.permute.xlu0 0
    %1355 = vperm.xlu0 %1354, %v1353
    %v1356 = vpop.permute.xlu0 %1355
    %vm1357 = vcmp.eq.s32.totalorder %v1356, 1
    %v1358 = vsel %vm1357, %v1349, %v1180
    %v1359 = vsel %vm1357, %v1349, 0.0
    %s1360 = scalar_lea.vmem [#allocation8], 48
    %1361 = vst [vmem:[%s1360] sm:$0xff] %v1359
    %s1362 = scalar_lea.vmem [#allocation3], 168
    %v1363 = vld [vmem:[%s1362] sm:$0xff]
    %v1364 = vld [vmem:[%s1362 + $0x8] sm:$0xff]
    %v1365 = vld [vmem:[%s1362 + $0x10] sm:$0xff]
    %1366 = vmatprep.subr.mxu0 %v52
    %1367 = vmatpush1.msra.mxu0 %v51
    %1368 = vmatprep.subr.mxu0 %v55
    %1369 = vmatpush1.msra.mxu0 %v54
    %1370 = vmatprep.subr.mxu0 %v58
    %1371 = vmatpush1.msra.mxu0 %v57
    %1372 = vmatprep.subr.mxu0 %v61
    %1373 = vmatpush1.msra.mxu0 %v60
    %1374 = vmatprep.subr.mxu0 %v64
    %1375 = vmatpush1.msra.mxu0 %v63
    %1376 = vmatprep.subr.mxu0 %v67
    %1377 = vmatpush1.msra.mxu0 %v66
    %1378 = vmatprep.subr.mxu0 %v70
    %1379 = vmatpush1.msra.mxu0 %v69
    %1380 = vmatprep.subr.mxu0 %v73
    %1381 = vmatpush1.msra.mxu0 %v72
    %1382 = vmatprep.subr.mxu0 %v76
    %1383 = vmatpush1.msra.mxu0 %v75
    %1384 = vmatprep.subr.mxu0 %v79
    %1385 = vmatpush1.msra.mxu0 %v78
    %1386 = vmatprep.subr.mxu0 %v82
    %1387 = vmatpush1.msra.mxu0 %v81
    %1388 = vmatprep.subr.mxu0 %v85
    %1389 = vmatpush1.msra.mxu0 %v84
    %1390 = vmatprep.subr.mxu0 %v88
    %1391 = vmatpush1.msra.mxu0 %v87
    %1392 = vmatprep.subr.mxu0 %v91
    %1393 = vmatpush1.msra.mxu0 %v90
    %1394 = vmatprep.subr.mxu0 %v94
    %1395 = vmatpush1.msra.mxu0 %v93
    %1396 = vmatprep.subr.mxu0 %v97
    %1397 = vmatpush1.msra.mxu0 %v96
    %1398 = vmatprep.subr.mxu0 0.0
    %1399 = vmatpush1.msra.mxu0 0.0
    %1400 = vmatprep.subr.mxu0 0.0
    %1401 = vmatpush1.msra.mxu0 0.0
    %1402 = vmatprep.subr.mxu0 0.0
    %1403 = vmatpush1.msra.mxu0 0.0
    %1404 = vmatprep.subr.mxu0 0.0
    %1405 = vmatpush1.msra.mxu0 0.0
    %1406 = vmatprep.subr.mxu0 0.0
    %1407 = vmatpush1.msra.mxu0 0.0
    %1408 = vmatprep.subr.mxu0 0.0
    %1409 = vmatpush1.msra.mxu0 0.0
    %1410 = vmatprep.subr.mxu0 0.0
    %1411 = vmatpush1.msra.mxu0 0.0
    %1412 = vmatprep.subr.mxu0 0.0
    %1413 = vmatpush1.msra.mxu0 0.0
    %1414 = vmatprep.subr.mxu0 0.0
    %1415 = vmatpush1.msra.mxu0 0.0
    %1416 = vmatprep.subr.mxu0 0.0
    %1417 = vmatpush1.msra.mxu0 0.0
    %1418 = vmatprep.subr.mxu0 0.0
    %1419 = vmatpush1.msra.mxu0 0.0
    %1420 = vmatprep.subr.mxu0 0.0
    %1421 = vmatpush1.msra.mxu0 0.0
    %1422 = vmatprep.subr.mxu0 0.0
    %1423 = vmatpush1.msra.mxu0 0.0
    %1424 = vmatprep.subr.mxu0 0.0
    %1425 = vmatpush1.msra.mxu0 0.0
    %1426 = vmatprep.subr.mxu0 0.0
    %1427 = vmatpush1.msra.mxu0 0.0
    %1428 = vmatprep.subr.mxu0 0.0
    %1429 = vmatpush1.msra.mxu0 0.0
    %1430 = vmatprep.mubr.f32.mxu0 0.0
    %1431 = vmatmul.mubr.f32.gmra.mrb[0].mxu0 %v1358
    %v1432 = vpop.f32.mrb[0].mxu0
    %v1433 = vadd.f32 %v104, %v1432
    %v1434 = vpop.f32.mrb[0].mxu0
    %v1435 = vadd.f32 %v108, %v1434
    %1436 = vdwg.mxu0
    %1437 = vmatprep.subr.mxu0 0.0
    %1438 = vmatpush1.msra.mxu0 %v53
    %1439 = vmatprep.subr.mxu0 0.0
    %1440 = vmatpush1.msra.mxu0 %v56
    %1441 = vmatprep.subr.mxu0 0.0
    %1442 = vmatpush1.msra.mxu0 %v59
    %1443 = vmatprep.subr.mxu0 0.0
    %1444 = vmatpush1.msra.mxu0 %v62
    %1445 = vmatprep.subr.mxu0 0.0
    %1446 = vmatpush1.msra.mxu0 %v65
    %1447 = vmatprep.subr.mxu0 0.0
    %1448 = vmatpush1.msra.mxu0 %v68
    %1449 = vmatprep.subr.mxu0 0.0
    %1450 = vmatpush1.msra.mxu0 %v71
    %1451 = vmatprep.subr.mxu0 0.0
    %1452 = vmatpush1.msra.mxu0 %v74
    %1453 = vmatprep.subr.mxu0 0.0
    %1454 = vmatpush1.msra.mxu0 %v77
    %1455 = vmatprep.subr.mxu0 0.0
    %1456 = vmatpush1.msra.mxu0 %v80
    %1457 = vmatprep.subr.mxu0 0.0
    %1458 = vmatpush1.msra.mxu0 %v83
    %1459 = vmatprep.subr.mxu0 0.0
    %1460 = vmatpush1.msra.mxu0 %v86
    %1461 = vmatprep.subr.mxu0 0.0
    %1462 = vmatpush1.msra.mxu0 %v89
    %1463 = vmatprep.subr.mxu0 0.0
    %1464 = vmatpush1.msra.mxu0 %v92
    %1465 = vmatprep.subr.mxu0 0.0
    %1466 = vmatpush1.msra.mxu0 %v95
    %1467 = vmatprep.subr.mxu0 0.0
    %1468 = vmatpush1.msra.mxu0 %v98
    %1469 = vmatprep.subr.mxu0 0.0
    %1470 = vmatpush1.msra.mxu0 0.0
    %1471 = vmatprep.subr.mxu0 0.0
    %1472 = vmatpush1.msra.mxu0 0.0
    %1473 = vmatprep.subr.mxu0 0.0
    %1474 = vmatpush1.msra.mxu0 0.0
    %1475 = vmatprep.subr.mxu0 0.0
    %1476 = vmatpush1.msra.mxu0 0.0
    %1477 = vmatprep.subr.mxu0 0.0
    %1478 = vmatpush1.msra.mxu0 0.0
    %1479 = vmatprep.subr.mxu0 0.0
    %1480 = vmatpush1.msra.mxu0 0.0
    %1481 = vmatprep.subr.mxu0 0.0
    %1482 = vmatpush1.msra.mxu0 0.0
    %1483 = vmatprep.subr.mxu0 0.0
    %1484 = vmatpush1.msra.mxu0 0.0
    %1485 = vmatprep.subr.mxu0 0.0
    %1486 = vmatpush1.msra.mxu0 0.0
    %1487 = vmatprep.subr.mxu0 0.0
    %1488 = vmatpush1.msra.mxu0 0.0
    %1489 = vmatprep.subr.mxu0 0.0
    %1490 = vmatpush1.msra.mxu0 0.0
    %1491 = vmatprep.subr.mxu0 0.0
    %1492 = vmatpush1.msra.mxu0 0.0
    %1493 = vmatprep.subr.mxu0 0.0
    %1494 = vmatpush1.msra.mxu0 0.0
    %1495 = vmatprep.subr.mxu0 0.0
    %1496 = vmatpush1.msra.mxu0 0.0
    %1497 = vmatprep.subr.mxu0 0.0
    %1498 = vmatpush1.msra.mxu0 0.0
    %1499 = vmatprep.subr.mxu0 0.0
    %1500 = vmatpush1.msra.mxu0 0.0
    %1501 = vmatprep.mubr.f32.mxu0 0.0
    %1502 = vmatmul.mubr.f32.gmra.mrb[0].mxu0 %v1358
    %v1503 = vpop.f32.mrb[0].mxu0
    %v1504 = vadd.f32 %v112, %v1503
    %v1505 = vpop.f32.mrb[0].mxu0
    %1506 = vdwg.mxu0
    %v1507 = vadd.f32 %v1363, %v1433
    %v1508 = vxor.u32 %v1507, 2147483648
    %v1509 = vmul.f32 %v1508, 1.442695
    %v1510 = vpow.pop %v1509
    %v1511 = vadd.f32 %v1510, 1.0
    %v1512 = vrcp.pop %v1511
    %v1513 = vmul.f32 1.0, %v1512
    %v1514 = vadd.f32 %v1364, %v1435
    %v1515 = vxor.u32 %v1514, 2147483648
    %v1516 = vmul.f32 %v1515, 1.442695
    %v1517 = vpow.pop %v1516
    %v1518 = vadd.f32 %v1517, 1.0
    %v1519 = vrcp.pop %v1518
    %v1520 = vmul.f32 1.0, %v1519
    %v1521 = vmul.f32 %v1513, %v1504
    %v1522 = vadd.f32 %v1365, %v1521
    %v1523 = vtanh.pop %v1522
    %v1524 = vsub.f32 1.0, %v1520
    %v1525 = vmul.f32 %v1524, %v1523
    %v1526 = vmul.f32 %v1520, %v1358
    %v1527 = vadd.f32 %v1525, %v1526
    %s1528 = sadd.s32 %s117, 7
    %v1529 = vstv %s1528
    %vm1530 = vcmp.lt.s32.totalorder %v1529, %v116
    %v1531 = vsel %vm1530, 1, 0
    %1532 = vset.pattern.permute.xlu0 0
    %1533 = vperm.xlu0 %1532, %v1531
    %v1534 = vpop.permute.xlu0 %1533
    %vm1535 = vcmp.eq.s32.totalorder %v1534, 1
    %v1536 = vsel %vm1535, %v1527, %v1358
    %v1537 = vsel %vm1535, %v1527, 0.0
    %s1538 = scalar_lea.vmem [#allocation8], 56
    %1539 = vst [vmem:[%s1538] sm:$0xff] %v1537
    %1540 = vst [vmem:[#allocation2] sm:$0xff] %v1536
    // Predicated region
    $region30: #{tpu_custom_call.1} parent=1 // pred_check
      _
    $region31: #{tpu_custom_call.1} parent=1 // pred_check_branch
      %1542 = sbr.rel (0) target = $region33
    $region32: #{tpu_custom_call.1} parent=1 // pred_region
      %s1544 = ssub.s32 1024, 1024
      %1545 = vsyncadd [#allocation5], %s1544
      %s1546 = sshll.u32 [#allocation8], 4
      %s1547 = int_to_ptr.vmem [resolvable:$true] %s1546
      %1552 = dma.vmem_to_hbm [thread:$0]  %s1547, 1024, %s4, [#allocation5], 128, 128, 8
    $region33: #{tpu_custom_call.1} parent=1 // pred_fallthru
      _
    // Predicated region
    $region34: #{tpu_custom_call.1} parent=1 // pred_check
      _
    $region35: #{tpu_custom_call.1} parent=1 // pred_check_branch
      %1554 = sbr.rel (0) target = $region37
    $region36: #{tpu_custom_call.1} parent=1 // pred_region
      %1555 = dma.done [#allocation5], 1024
    $region37: #{tpu_custom_call.1} parent=1 // pred_fallthru
      _
    %1556 = vsyncpa [#allocation4], 1
    %1557 = vsyncpa [#allocation7], 1
    %1558 = vsyncpa [#allocation5], 1

</llo_original>
